<compile_context>
chip_gen: v5e
topology: v5e:2x2
jax: 0.10.0
libtpu: 0.0.40
codegen_flags: <defaults>
</compile_context>

<pallas_src>
import functools

import jax
import jax.numpy as jnp
from jax import lax
from jax.experimental import pallas as pl
from jax.experimental.pallas import tpu as pltpu

LEAKY_SLOPE = 0.01   # nn.LeakyReLU default
BN_EPS = 1e-5        # nn.BatchNorm1d default


def _round_up(x, m):
    return ((x + m - 1) // m) * m


# ----------------------------------------------------------------------------
# Pallas kernel: fused Flatten(done in glue) -> LeakyReLU -> BatchNorm1d(eval)
#                -> Dropout(eval, identity) -> Linear(+bias)
# ----------------------------------------------------------------------------
def embedder_kernel(x_ref, gamma_ref, beta_ref, mean_ref, var_ref,
                    w_ref, b_ref, o_ref, *, neg_slope, eps):
    # LeakyReLU on the f32 activation tile (VPU).
    x = x_ref[...]                                        # (tm, Kp) f32
    x = jnp.where(x >= 0, x, neg_slope * x)

    # BatchNorm1d (eval): (x - mean) * gamma * rsqrt(var + eps) + beta  (EUP rsqrt).
    scale = gamma_ref[...] * lax.rsqrt(var_ref[...] + eps)   # (1, Kp)
    xn = (x - mean_ref[...]) * scale + beta_ref[...]

    # Dropout(p=0.5): identity in eval mode.

    # Linear: bf16 operands into the MXU, f32 accumulate, f32 bias add.
    acc = jnp.dot(xn.astype(jnp.bfloat16), w_ref[...],
                  preferred_element_type=jnp.float32)        # (tm, tn) f32
    o_ref[...] = (acc + b_ref[...]).astype(o_ref.dtype)


# ----------------------------------------------------------------------------
# Wrapper: padding / tiling glue around the single fused pallas_call
# ----------------------------------------------------------------------------
def embedder_forward(params, x, *, tile_n=128, max_tile_m=256):
    B = x.shape[0]
    x2d = x.reshape(B, -1).astype(jnp.float32)            # nn.Flatten
    K = x2d.shape[1]
    w, b = params["w"], params["b"]                        # w: (K, E) == W.T
    assert w.shape[0] == K, (w.shape, K)
    E = w.shape[1]

    # Lane-dense / sublane-friendly padding.
    Kp = _round_up(K, 128)
    Ep = _round_up(E, tile_n)
    tm = B if B <= max_tile_m else max_tile_m
    Mp = _round_up(B, tm)

    def pad2(a, rows, cols, fill=0.0):
        return jnp.pad(a, ((0, rows - a.shape[0]), (0, cols - a.shape[1])),
                       constant_values=fill)

    xp    = pad2(x2d, Mp, Kp)
    gamma = pad2(params["gamma"], 1, Kp)
    beta  = pad2(params["beta"], 1, Kp)
    mean  = pad2(params["mean"], 1, Kp)
    var   = pad2(params["var"], 1, Kp, fill=1.0)
    wp    = pad2(w.astype(jnp.bfloat16), Kp, Ep)           # bf16 weights for the MXU
    bp    = pad2(b, 1, Ep)

    grid = (Mp // tm, Ep // tile_n)

    out = pl.pallas_call(
        functools.partial(embedder_kernel, neg_slope=LEAKY_SLOPE, eps=BN_EPS),
        out_shape=jax.ShapeDtypeStruct((Mp, Ep), jnp.float32),
        grid_spec=pltpu.PrefetchScalarGridSpec(
            num_scalar_prefetch=0,
            grid=grid,
            in_specs=[
                pl.BlockSpec((tm, Kp), lambda i, j: (i, 0)),      # activations
                pl.BlockSpec((1, Kp), lambda i, j: (0, 0)),       # gamma
                pl.BlockSpec((1, Kp), lambda i, j: (0, 0)),       # beta
                pl.BlockSpec((1, Kp), lambda i, j: (0, 0)),       # running_mean
                pl.BlockSpec((1, Kp), lambda i, j: (0, 0)),       # running_var
                pl.BlockSpec((Kp, tile_n), lambda i, j: (0, j)),  # weight (bf16)
                pl.BlockSpec((1, tile_n), lambda i, j: (0, j)),   # bias
            ],
            out_specs=pl.BlockSpec((tm, tile_n), lambda i, j: (i, j)),
        ),
        compiler_params=pltpu.CompilerParams(
            dimension_semantics=("parallel", "parallel"),
        ),
    )(xp, gamma, beta, mean, var, wp, bp)

    return out[:B, :E]


# ----------------------------------------------------------------------------
# Pure-JAX reference (f32) for a correctness check
# ----------------------------------------------------------------------------
def embedder_reference(params, x):
    B = x.shape[0]
    y = x.reshape(B, -1).astype(jnp.float32)
    y = jnp.where(y >= 0, y, LEAKY_SLOPE * y)
    y = (y - params["mean"]) / jnp.sqrt(params["var"] + BN_EPS) * params["gamma"] + params["beta"]
    return y @ params["w"] + params["b"]


def init_params(key, input_size, embedding_size):
    kw, kb, kg, kbt, km, kv = jax.random.split(key, 6)
    w = jax.random.normal(kw, (input_size, embedding_size), jnp.float32) * (1.0 / input_size) ** 0.5
    b = 0.01 * jax.random.normal(kb, (1, embedding_size), jnp.float32)
    gamma = 1.0 + 0.1 * jax.random.normal(kg, (1, input_size), jnp.float32)
    beta = 0.1 * jax.random.normal(kbt, (1, input_size), jnp.float32)
    mean = 0.1 * jax.random.normal(km, (1, input_size), jnp.float32)
    var = 1.0 + 0.1 * jnp.abs(jax.random.normal(kv, (1, input_size), jnp.float32))
    return dict(w=w, b=b, gamma=gamma, beta=beta, mean=mean, var=var)


if __name__ == "__main__":
    key = jax.random.PRNGKey(0)
    pkey, xkey = jax.random.split(key)

    # Small shapes consistent with the module: x is flattened to input_size.
    B, C, H, W = 2, 4, 16, 16
    input_size = C * H * W            # 1024
    embedding_size = 256              # lane-dense multiple of 128 (spec default is 512)

    params = init_params(pkey, input_size, embedding_size)
    x = jax.random.normal(xkey, (B, C, H, W), jnp.float32)

    out = jax.jit(embedder_forward)(params, x)
    out = jax.block_until_ready(out)

    assert out.shape == (B, embedding_size), out.shape
    assert bool(jnp.all(jnp.isfinite(out)))

    ref = embedder_reference(params, x)
    err = float(jnp.max(jnp.abs(out - ref)))
    assert bool(jnp.allclose(out, ref, rtol=5e-2, atol=5e-2)), err  # bf16-matmul tolerance

    print("KERNEL_OK")
</pallas_src>

<mosaic_0001>
module attributes {stable_mosaic.version = 11 : i64} {
  func.func @embedder_kernel(%arg0: i32, %arg1: i32, %arg2: memref<2x1024xf32, #tpu.memory_space<vmem>>, %arg3: memref<1x1024xf32, #tpu.memory_space<vmem>>, %arg4: memref<1x1024xf32, #tpu.memory_space<vmem>>, %arg5: memref<1x1024xf32, #tpu.memory_space<vmem>>, %arg6: memref<1x1024xf32, #tpu.memory_space<vmem>>, %arg7: memref<1024x128xbf16, #tpu.memory_space<vmem>>, %arg8: memref<1x128xf32, #tpu.memory_space<vmem>>, %arg9: memref<2x128xf32, #tpu.memory_space<vmem>>) attributes {dimension_semantics = [#tpu.dimension_semantics<parallel>, #tpu.dimension_semantics<parallel>], iteration_bounds = array<i64: 1, 2>, scalar_prefetch = 0 : i64, scratch_operands = 0 : i64, tpu.core_type = #tpu.core_type<tc>, window_params = [{transform_indices = @transform_0, window_bounds = array<i64: 2, 1024>}, {pipeline_mode = #tpu.pipeline_mode<synchronous>, transform_indices = @transform_1, window_bounds = array<i64: 1, 1024>}, {pipeline_mode = #tpu.pipeline_mode<synchronous>, transform_indices = @transform_2, window_bounds = array<i64: 1, 1024>}, {pipeline_mode = #tpu.pipeline_mode<synchronous>, transform_indices = @transform_3, window_bounds = array<i64: 1, 1024>}, {pipeline_mode = #tpu.pipeline_mode<synchronous>, transform_indices = @transform_4, window_bounds = array<i64: 1, 1024>}, {transform_indices = @transform_5, window_bounds = array<i64: 1024, 128>}, {transform_indices = @transform_6, window_bounds = array<i64: 1, 128>}, {transform_indices = @transform_7, window_bounds = array<i64: 2, 128>}]} {
    %c0 = arith.constant 0 : index
    %c0_0 = arith.constant 0 : index
    %0 = vector.load %arg2[%c0, %c0_0] : memref<2x1024xf32, #tpu.memory_space<vmem>>, vector<2x1024xf32>
    %cst = arith.constant 0.000000e+00 : f32
    %1 = vector.broadcast %cst : f32 to vector<2x1024xf32>
    %2 = arith.cmpf oge, %0, %1 : vector<2x1024xf32>
    %cst_1 = arith.constant 0.00999999977 : f32
    %3 = vector.broadcast %cst_1 : f32 to vector<2x1024xf32>
    %4 = arith.mulf %3, %0 : vector<2x1024xf32>
    %5 = arith.select %2, %0, %4 : vector<2x1024xi1>, vector<2x1024xf32>
    %c0_2 = arith.constant 0 : index
    %c0_3 = arith.constant 0 : index
    %6 = vector.load %arg3[%c0_2, %c0_3] : memref<1x1024xf32, #tpu.memory_space<vmem>>, vector<1x1024xf32>
    %c0_4 = arith.constant 0 : index
    %c0_5 = arith.constant 0 : index
    %7 = vector.load %arg6[%c0_4, %c0_5] : memref<1x1024xf32, #tpu.memory_space<vmem>>, vector<1x1024xf32>
    %cst_6 = arith.constant 9.99999974E-6 : f32
    %8 = vector.broadcast %cst_6 : f32 to vector<1x1024xf32>
    %9 = arith.addf %7, %8 : vector<1x1024xf32>
    %10 = math.rsqrt %9 : vector<1x1024xf32>
    %11 = arith.mulf %6, %10 : vector<1x1024xf32>
    %c0_7 = arith.constant 0 : index
    %c0_8 = arith.constant 0 : index
    %12 = vector.load %arg5[%c0_7, %c0_8] : memref<1x1024xf32, #tpu.memory_space<vmem>>, vector<1x1024xf32>
    %13 = vector.broadcast %12 : vector<1x1024xf32> to vector<2x1024xf32>
    %14 = arith.subf %5, %13 : vector<2x1024xf32>
    %15 = vector.broadcast %11 : vector<1x1024xf32> to vector<2x1024xf32>
    %16 = arith.mulf %14, %15 : vector<2x1024xf32>
    %c0_9 = arith.constant 0 : index
    %c0_10 = arith.constant 0 : index
    %17 = vector.load %arg4[%c0_9, %c0_10] : memref<1x1024xf32, #tpu.memory_space<vmem>>, vector<1x1024xf32>
    %18 = vector.broadcast %17 : vector<1x1024xf32> to vector<2x1024xf32>
    %19 = arith.addf %16, %18 : vector<2x1024xf32>
    %20 = arith.truncf %19 : vector<2x1024xf32> to vector<2x1024xbf16>
    %c0_11 = arith.constant 0 : index
    %c0_12 = arith.constant 0 : index
    %21 = vector.load %arg7[%c0_11, %c0_12] : memref<1024x128xbf16, #tpu.memory_space<vmem>>, vector<1024x128xbf16>
    %cst_13 = arith.constant dense<0.000000e+00> : vector<2x128xf32>
    %22 = tpu.matmul %20, %21, %cst_13 {dimension_numbers = #tpu.dot_dimension_numbers<[1], [0], [0], [1], [0, 0, 1, 1], [], []>} : vector<2x1024xbf16>, vector<1024x128xbf16>, vector<2x128xf32> -> vector<2x128xf32>
    %c0_14 = arith.constant 0 : index
    %c0_15 = arith.constant 0 : index
    %23 = vector.load %arg8[%c0_14, %c0_15] : memref<1x128xf32, #tpu.memory_space<vmem>>, vector<1x128xf32>
    %24 = vector.broadcast %23 : vector<1x128xf32> to vector<2x128xf32>
    %25 = arith.addf %22, %24 : vector<2x128xf32>
    %c0_16 = arith.constant 0 : index
    %c0_17 = arith.constant 0 : index
    %26 = vector.load %arg9[%c0_16, %c0_17] : memref<2x128xf32, #tpu.memory_space<vmem>>, vector<2x128xf32>
    tpu.vector_store %arg9[%c0_16, %c0_17], %25 {strides = array<i32>} : memref<2x128xf32, #tpu.memory_space<vmem>>, vector<2x128xf32>,
    return
  }
  func.func @transform_0(%arg0: i32, %arg1: i32) -> (i32, i32) {
    %c0_i32 = arith.constant 0 : i32
    %c0_i32_0 = arith.constant 0 : i32
    return %arg0, %c0_i32 : i32, i32
  }
  func.func @transform_1(%arg0: i32, %arg1: i32) -> (i32, i32) {
    %c0_i32 = arith.constant 0 : i32
    %c0_i32_0 = arith.constant 0 : i32
    %c0_i32_1 = arith.constant 0 : i32
    return %c0_i32, %c0_i32_0 : i32, i32
  }
  func.func @transform_2(%arg0: i32, %arg1: i32) -> (i32, i32) {
    %c0_i32 = arith.constant 0 : i32
    %c0_i32_0 = arith.constant 0 : i32
    %c0_i32_1 = arith.constant 0 : i32
    return %c0_i32, %c0_i32_0 : i32, i32
  }
  func.func @transform_3(%arg0: i32, %arg1: i32) -> (i32, i32) {
    %c0_i32 = arith.constant 0 : i32
    %c0_i32_0 = arith.constant 0 : i32
    %c0_i32_1 = arith.constant 0 : i32
    return %c0_i32, %c0_i32_0 : i32, i32
  }
  func.func @transform_4(%arg0: i32, %arg1: i32) -> (i32, i32) {
    %c0_i32 = arith.constant 0 : i32
    %c0_i32_0 = arith.constant 0 : i32
    %c0_i32_1 = arith.constant 0 : i32
    return %c0_i32, %c0_i32_0 : i32, i32
  }
  func.func @transform_5(%arg0: i32, %arg1: i32) -> (i32, i32) {
    %c0_i32 = arith.constant 0 : i32
    %c0_i32_0 = arith.constant 0 : i32
    return %c0_i32, %arg1 : i32, i32
  }
  func.func @transform_6(%arg0: i32, %arg1: i32) -> (i32, i32) {
    %c0_i32 = arith.constant 0 : i32
    %c0_i32_0 = arith.constant 0 : i32
    return %c0_i32, %arg1 : i32, i32
  }
  func.func @transform_7(%arg0: i32, %arg1: i32) -> (i32, i32) {
    %c0_i32 = arith.constant 0 : i32
    return %arg0, %arg1 : i32, i32
  }
}

</mosaic_0001>

<llo_original>
// kernel: embedder_forward.1
$region0: #{embedder_forward.1}
  #allocation0 [shape = 'u32[]', space=smem, size = 0x4, offset = 0x4, fixed_abs, tag = 'smem constant byte address 0x4 - core index']
  #allocation1 [shape = 'u32[72,128]{1,0:T(1,128)}', space=vmem, size = 0x9000, scoped, tag = 'internal scratch']
  %s0 = inlined_call_operand.vmem [shape: f32[2,1024], index: 0, kind: input, shape index: {}]
  %s1 = inlined_call_operand.vmem [shape: f32[1,1024], index: 1, kind: input, shape index: {}]
  %s2 = inlined_call_operand.vmem [shape: f32[1,1024], index: 2, kind: input, shape index: {}]
  %s3 = inlined_call_operand.vmem [shape: f32[1,1024], index: 3, kind: input, shape index: {}]
  %s4 = inlined_call_operand.vmem [shape: f32[1,1024], index: 4, kind: input, shape index: {}]
  %s5 = inlined_call_operand.vmem [shape: bf16[1024,256], index: 5, kind: input, shape index: {}]
  %s6 = inlined_call_operand.vmem [shape: f32[1,256], index: 6, kind: input, shape index: {}]
  %s7 = inlined_call_operand.hbm [shape: f32[2,256], index: 7, kind: output, shape index: {}]
  %s8 = sld [smem:[#allocation0]]
  $region102: #{embedder_forward.1} parent=0
    _
  %s10 = ssub.s32 1, %s8
  %s11 = scalar_select 0, %s10, %s8
  $region1: #{embedder_forward.1} parent=0
    #allocation2 [shape = 'u8[524288]{0}', space=vmem, size = 0x80000, scoped, tag = 'input window, operand 5']
    #allocation3 [shape = 'u8[2048]{0}', space=vmem, size = 0x800, scoped, tag = 'output window, operand 0']
    #allocation4 [shape = 's32[2]{0}', space=sflag, size = 0x8, scoped, tag = 'scoped memory for embedder_forward.1']
    %12 = vsyncpa [#allocation4], 0
    %s13 = scalar_lea.sflag [#allocation4], 1
    %14 = vsyncpa %s13, 0
    loop: start=0, step=1, limit=4
    $region2: #{embedder_forward.1} parent=1 // loop_pre_header
      _
    $region3: #{embedder_forward.1} parent=1 // loop_header
      %s16 = sphi 0, %s20
      %p17 = scmp.ge.s32.totalorder %s16, 4
      %s23 = sphi 0, %s35
      %s24 = sphi 0, %s31
      %s25 = sphi 0, %s23
      %s26 = sphi 0, %s24
      %s27 = sphi 0, %s25
      %s28 = sphi 0, %s26
      %s38 = sphi 0, %s40
      %s41 = sphi 0, %s38
      %s42 = sphi 0, %s41
      %s58 = sphi 0, %s42
      %s62 = sphi 0, %s62
      %s64 = sphi 0, %s62
      %s65 = sphi 0, %s64
      %s79 = sphi 0, %s65
      %s83 = sphi 0, %s83
      %s85 = sphi 0, %s83
      %s86 = sphi 0, %s85
      %s100 = sphi 0, %s86
      %s104 = sphi 0, %s104
      %s106 = sphi 0, %s104
      %s107 = sphi 0, %s106
      %s121 = sphi 0, %s107
      %s125 = sphi 0, %s125
      %s127 = sphi 0, %s125
      %s128 = sphi 0, %s127
      %s142 = sphi 0, %s128
      %s148 = sphi 0, %s150
      %s151 = sphi 0, %s148
      %s152 = sphi 0, %s151
      %s168 = sphi 0, %s152
      %s174 = sphi 0, %s176
      %s177 = sphi 0, %s174
      %s178 = sphi 0, %s177
      %s194 = sphi 0, %s178
      %s202 = sphi 0, %s204
      %s205 = sphi 0, %s202
      %s206 = sphi 0, %s205
      %s222 = sphi 0, %s206
    $region4: #{embedder_forward.1} parent=1 // loop_header_branch
      %19 = sbr.rel (%p17) target = $region8
    $region5: #{embedder_forward.1} parent=1 // loop_body
      %s21 = ssub.s32 %s16, 1
      %s22 = ssub.s32 %s16, 2
      %s29 = sadd.s32 1, %s24
      %p30 = scmp.ge.s32.totalorder %s29, 2
      %s31 = scalar_select %p30, 0, %s29
      %s32 = sadd.s32 1, %s23
      %s33 = scalar_select %p30, %s32, %s23
      %p34 = scmp.ge.s32.totalorder %s33, 1
      %s35 = scalar_select %p34, 0, %s33
      %s36 = ssub.s32 %s23, %s35
      %p37 = scmp.eq.s32.totalorder %s36, 0
      %s39 = sadd.s32 %s38, 1
      %s40 = scalar_select %p37, %s38, %s39
      %p43 = pneg %p37
      %p44 = scmp.eq.s32.totalorder %s16, 1
      %p45 = por %p43, %p44
      %p46 = scmp.ne.s32.totalorder %s38, %s41
      %p47 = scmp.eq.s32.totalorder %s16, 0
      %p48 = por %p46, %p47
      %p49 = scmp.ne.s32.totalorder %s38, %s41
      %p50 = scmp.eq.s32.totalorder %s21, 1
      %p51 = por %p49, %p50
      %p52 = scmp.ne.s32.totalorder %s41, %s42
      %p53 = scmp.eq.s32.totalorder %s21, 0
      %p54 = por %p52, %p53
      %p55 = scmp.ne.s32.totalorder %s41, %s42
      %p56 = scmp.eq.s32.totalorder %s22, 1
      %p57 = por %p55, %p56
      %p59 = scmp.ne.s32.totalorder %s42, %s58
      %p60 = scmp.eq.s32.totalorder %s22, 0
      %p61 = por %p59, %p60
      %s63 = sadd.s32 %s62, 1
      %p66 = scmp.eq.s32.totalorder %s16, 1
      %p67 = scmp.ne.s32.totalorder %s62, %s64
      %p68 = scmp.eq.s32.totalorder %s16, 0
      %p69 = por %p67, %p68
      %p70 = scmp.ne.s32.totalorder %s62, %s64
      %p71 = scmp.eq.s32.totalorder %s21, 1
      %p72 = por %p70, %p71
      %p73 = scmp.ne.s32.totalorder %s64, %s65
      %p74 = scmp.eq.s32.totalorder %s21, 0
      %p75 = por %p73, %p74
      %p76 = scmp.ne.s32.totalorder %s64, %s65
      %p77 = scmp.eq.s32.totalorder %s22, 1
      %p78 = por %p76, %p77
      %p80 = scmp.ne.s32.totalorder %s65, %s79
      %p81 = scmp.eq.s32.totalorder %s22, 0
      %p82 = por %p80, %p81
      %s84 = sadd.s32 %s83, 1
      %p87 = scmp.eq.s32.totalorder %s16, 1
      %p88 = scmp.ne.s32.totalorder %s83, %s85
      %p89 = scmp.eq.s32.totalorder %s16, 0
      %p90 = por %p88, %p89
      %p91 = scmp.ne.s32.totalorder %s83, %s85
      %p92 = scmp.eq.s32.totalorder %s21, 1
      %p93 = por %p91, %p92
      %p94 = scmp.ne.s32.totalorder %s85, %s86
      %p95 = scmp.eq.s32.totalorder %s21, 0
      %p96 = por %p94, %p95
      %p97 = scmp.ne.s32.totalorder %s85, %s86
      %p98 = scmp.eq.s32.totalorder %s22, 1
      %p99 = por %p97, %p98
      %p101 = scmp.ne.s32.totalorder %s86, %s100
      %p102 = scmp.eq.s32.totalorder %s22, 0
      %p103 = por %p101, %p102
      %s105 = sadd.s32 %s104, 1
      %p108 = scmp.eq.s32.totalorder %s16, 1
      %p109 = scmp.ne.s32.totalorder %s104, %s106
      %p110 = scmp.eq.s32.totalorder %s16, 0
      %p111 = por %p109, %p110
      %p112 = scmp.ne.s32.totalorder %s104, %s106
      %p113 = scmp.eq.s32.totalorder %s21, 1
      %p114 = por %p112, %p113
      %p115 = scmp.ne.s32.totalorder %s106, %s107
      %p116 = scmp.eq.s32.totalorder %s21, 0
      %p117 = por %p115, %p116
      %p118 = scmp.ne.s32.totalorder %s106, %s107
      %p119 = scmp.eq.s32.totalorder %s22, 1
      %p120 = por %p118, %p119
      %p122 = scmp.ne.s32.totalorder %s107, %s121
      %p123 = scmp.eq.s32.totalorder %s22, 0
      %p124 = por %p122, %p123
      %s126 = sadd.s32 %s125, 1
      %p129 = scmp.eq.s32.totalorder %s16, 1
      %p130 = scmp.ne.s32.totalorder %s125, %s127
      %p131 = scmp.eq.s32.totalorder %s16, 0
      %p132 = por %p130, %p131
      %p133 = scmp.ne.s32.totalorder %s125, %s127
      %p134 = scmp.eq.s32.totalorder %s21, 1
      %p135 = por %p133, %p134
      %p136 = scmp.ne.s32.totalorder %s127, %s128
      %p137 = scmp.eq.s32.totalorder %s21, 0
      %p138 = por %p136, %p137
      %p139 = scmp.ne.s32.totalorder %s127, %s128
      %p140 = scmp.eq.s32.totalorder %s22, 1
      %p141 = por %p139, %p140
      %p143 = scmp.ne.s32.totalorder %s128, %s142
      %p144 = scmp.eq.s32.totalorder %s22, 0
      %p145 = por %p143, %p144
      %s146 = ssub.s32 %s24, %s31
      %p147 = scmp.eq.s32.totalorder %s146, 0
      %s149 = sadd.s32 %s148, 1
      %s150 = scalar_select %p147, %s148, %s149
      %p153 = pneg %p147
      %p154 = scmp.eq.s32.totalorder %s16, 1
      %p155 = por %p153, %p154
      %p156 = scmp.ne.s32.totalorder %s148, %s151
      %p157 = scmp.eq.s32.totalorder %s16, 0
      %p158 = por %p156, %p157
      %p159 = scmp.ne.s32.totalorder %s148, %s151
      %p160 = scmp.eq.s32.totalorder %s21, 1
      %p161 = por %p159, %p160
      %p162 = scmp.ne.s32.totalorder %s151, %s152
      %p163 = scmp.eq.s32.totalorder %s21, 0
      %p164 = por %p162, %p163
      %p165 = scmp.ne.s32.totalorder %s151, %s152
      %p166 = scmp.eq.s32.totalorder %s22, 1
      %p167 = por %p165, %p166
      %p169 = scmp.ne.s32.totalorder %s152, %s168
      %p170 = scmp.eq.s32.totalorder %s22, 0
      %p171 = por %p169, %p170
      %s172 = ssub.s32 %s24, %s31
      %p173 = scmp.eq.s32.totalorder %s172, 0
      %s175 = sadd.s32 %s174, 1
      %s176 = scalar_select %p173, %s174, %s175
      %p179 = pneg %p173
      %p180 = scmp.eq.s32.totalorder %s16, 1
      %p181 = por %p179, %p180
      %p182 = scmp.ne.s32.totalorder %s174, %s177
      %p183 = scmp.eq.s32.totalorder %s16, 0
      %p184 = por %p182, %p183
      %p185 = scmp.ne.s32.totalorder %s174, %s177
      %p186 = scmp.eq.s32.totalorder %s21, 1
      %p187 = por %p185, %p186
      %p188 = scmp.ne.s32.totalorder %s177, %s178
      %p189 = scmp.eq.s32.totalorder %s21, 0
      %p190 = por %p188, %p189
      %p191 = scmp.ne.s32.totalorder %s177, %s178
      %p192 = scmp.eq.s32.totalorder %s22, 1
      %p193 = por %p191, %p192
      %p195 = scmp.ne.s32.totalorder %s178, %s194
      %p196 = scmp.eq.s32.totalorder %s22, 0
      %p197 = por %p195, %p196
      %s198 = ssub.s32 %s23, %s35
      %s199 = ssub.s32 %s24, %s31
      %s200 = sor.u32 %s198, %s199
      %p201 = scmp.eq.s32.totalorder %s200, 0
      %s203 = sadd.s32 %s202, 1
      %s204 = scalar_select %p201, %s202, %s203
      %p207 = pneg %p201
      %p208 = scmp.eq.s32.totalorder %s16, 1
      %p209 = por %p207, %p208
      %p210 = scmp.ne.s32.totalorder %s202, %s205
      %p211 = scmp.eq.s32.totalorder %s16, 0
      %p212 = por %p210, %p211
      %p213 = scmp.ne.s32.totalorder %s202, %s205
      %p214 = scmp.eq.s32.totalorder %s21, 1
      %p215 = por %p213, %p214
      %p216 = scmp.ne.s32.totalorder %s205, %s206
      %p217 = scmp.eq.s32.totalorder %s21, 0
      %p218 = por %p216, %p217
      %p219 = scmp.ne.s32.totalorder %s205, %s206
      %p220 = scmp.eq.s32.totalorder %s22, 1
      %p221 = por %p219, %p220
      %p223 = scmp.ne.s32.totalorder %s206, %s222
      %p224 = scmp.eq.s32.totalorder %s22, 0
      %p225 = por %p223, %p224
      %p226 = scmp.le.s32.totalorder 1, %s16
      %p227 = scmp.lt.s32.totalorder %s16, 3
      %p228 = pnand %p226, %p227
      %p229 = pneg %p228
      // Predicated region
      $region9: #{embedder_forward.1} parent=5 // pred_check
        _
      $region10: #{embedder_forward.1} parent=5 // pred_check_branch
        %231 = sbr.rel (%p228) target = $region12
      $region11: #{embedder_forward.1} parent=5 // pred_region
        %s232 = ssub.s32 %s16, 1
        // Predicated region
        $region13: #{embedder_forward.1} parent=11 // pred_check
          %p233 = pneg %p54
        $region14: #{embedder_forward.1} parent=11 // pred_check_branch
          %235 = sbr.rel (%p233) target = $region16
        $region15: #{embedder_forward.1} parent=11 // pred_region
          %p236 = scmp.lt.s32.totalorder %s25, 0
          %s237 = scalar_select %p236, %s25, 0
          %s238 = smul.addr %s237, 8
          %s239 = smul.addr %s238, 2
          %s240 = scalar_lea.vmem %s0, %s239
        $region16: #{embedder_forward.1} parent=11 // pred_fallthru
          _
        // Predicated region
        $region17: #{embedder_forward.1} parent=11 // pred_check
          %p241 = pneg %p75
        $region18: #{embedder_forward.1} parent=11 // pred_check_branch
          %243 = sbr.rel (%p241) target = $region20
        $region19: #{embedder_forward.1} parent=11 // pred_region
          _
        $region20: #{embedder_forward.1} parent=11 // pred_fallthru
          _
        // Predicated region
        $region21: #{embedder_forward.1} parent=11 // pred_check
          %p244 = pneg %p96
        $region22: #{embedder_forward.1} parent=11 // pred_check_branch
          %246 = sbr.rel (%p244) target = $region24
        $region23: #{embedder_forward.1} parent=11 // pred_region
          _
        $region24: #{embedder_forward.1} parent=11 // pred_fallthru
          _
        // Predicated region
        $region25: #{embedder_forward.1} parent=11 // pred_check
          %p247 = pneg %p117
        $region26: #{embedder_forward.1} parent=11 // pred_check_branch
          %249 = sbr.rel (%p247) target = $region28
        $region27: #{embedder_forward.1} parent=11 // pred_region
          _
        $region28: #{embedder_forward.1} parent=11 // pred_fallthru
          _
        // Predicated region
        $region29: #{embedder_forward.1} parent=11 // pred_check
          %p250 = pneg %p138
        $region30: #{embedder_forward.1} parent=11 // pred_check_branch
          %252 = sbr.rel (%p250) target = $region32
        $region31: #{embedder_forward.1} parent=11 // pred_region
          _
        $region32: #{embedder_forward.1} parent=11 // pred_fallthru
          _
      $region12: #{embedder_forward.1} parent=5 // pred_fallthru
        _
      %p253 = scmp.lt.s32.totalorder %s16, 2
      // Predicated region
      $region33: #{embedder_forward.1} parent=5 // pred_check
        %p254 = pneg %p253
      $region34: #{embedder_forward.1} parent=5 // pred_check_branch
        %256 = sbr.rel (%p254) target = $region36
      $region35: #{embedder_forward.1} parent=5 // pred_region
        // Predicated region
        $region37: #{embedder_forward.1} parent=35 // pred_check
          %p257 = pneg %p158
        $region38: #{embedder_forward.1} parent=35 // pred_check_branch
          %259 = sbr.rel (%p257) target = $region40
        $region39: #{embedder_forward.1} parent=35 // pred_region
          %s260 = sand.u32 %s148, 1
          %s261 = sand.u32 %s148, 1
          %s262 = smul.addr %s261, 512
          %s263 = scalar_lea.vmem [#allocation2], %s262
          %s264 = smul.addr %s24, 4
          %s265 = scalar_lea.vmem %s5, %s264
          // Predicated region
          $region41: #{embedder_forward.1} parent=39 // pred_check
            _
          $region42: #{embedder_forward.1} parent=39 // pred_check_branch
            %267 = sbr.rel (0) target = $region44
          $region43: #{embedder_forward.1} parent=39 // pred_region
            // Predicated region
            $region45: #{embedder_forward.1} parent=43 // pred_check
              _
            $region46: #{embedder_forward.1} parent=43 // pred_check_branch
              %269 = sbr.rel target = $region48
            $region47: #{embedder_forward.1} parent=43 // pred_region
              // Predicated region
              $region60: #{embedder_forward.1} parent=47 // pred_check
                _
              $region61: #{embedder_forward.1} parent=47 // pred_check_branch
                %539 = sbr.rel (0) target = $region63
              $region62: #{embedder_forward.1} parent=47 // pred_region
                loop: start=0, step=1, limit=1
                $region64: #{embedder_forward.1} parent=62 // loop_pre_header
                  _
                $region65: #{embedder_forward.1} parent=62 // loop_header
                  %s541 = sphi 0, %s545
                  %p542 = scmp.ge.s32.totalorder %s541, 1
                  %s546 = sphi %s265, %s265
                  %s547 = sphi %s263, %s263
                $region66: #{embedder_forward.1} parent=62 // loop_header_branch
                  %544 = sbr.rel (%p542) target = $region70
                $region67: #{embedder_forward.1} parent=62 // loop_body
                  _
                $region68: #{embedder_forward.1} parent=62 // loop_footer
                  %s545 = sadd.s32 1, %s541
                $region69: #{embedder_forward.1} parent=62 // loop_footer_branch
                  %540 = sbr.rel target = $region65
                $region70: #{embedder_forward.1} parent=62 // loop_exit
                  _
                %s549 = ssub.s32 16, 1
                loop: start=0, step=1, limit=1
                $region71: #{embedder_forward.1} parent=62 // loop_pre_header
                  _
                $region72: #{embedder_forward.1} parent=62 // loop_header
                  %s551 = sphi 0, %s555
                  %p552 = scmp.ge.s32.totalorder %s551, 1
                  %s556 = sphi %s265, %s265
                  %s557 = sphi %s263, %s263
                $region73: #{embedder_forward.1} parent=62 // loop_header_branch
                  %554 = sbr.rel (%p552) target = $region77
                $region74: #{embedder_forward.1} parent=62 // loop_body
                  %v558 = vld [vmem:[%s556] sm:%s549]
                  %559 = vst [vmem:[%s557] sm:%s549] %v558
                  %v560 = vld [vmem:[%s556 + $0x8] sm:%s549]
                  %561 = vst [vmem:[%s557 + $0x4] sm:%s549] %v560
                  %v562 = vld [vmem:[%s556 + $0x10] sm:%s549]
                  %563 = vst [vmem:[%s557 + $0x8] sm:%s549] %v562
                  %v564 = vld [vmem:[%s556 + $0x18] sm:%s549]
                  %565 = vst [vmem:[%s557 + $0xc] sm:%s549] %v564
                  %v566 = vld [vmem:[%s556 + $0x20] sm:%s549]
                  %567 = vst [vmem:[%s557 + $0x10] sm:%s549] %v566
                  %v568 = vld [vmem:[%s556 + $0x28] sm:%s549]
                  %569 = vst [vmem:[%s557 + $0x14] sm:%s549] %v568
                  %v570 = vld [vmem:[%s556 + $0x30] sm:%s549]
                  %571 = vst [vmem:[%s557 + $0x18] sm:%s549] %v570
                  %v572 = vld [vmem:[%s556 + $0x38] sm:%s549]
                  %573 = vst [vmem:[%s557 + $0x1c] sm:%s549] %v572
                  %v574 = vld [vmem:[%s556 + $0x40] sm:%s549]
                  %575 = vst [vmem:[%s557 + $0x20] sm:%s549] %v574
                  %v576 = vld [vmem:[%s556 + $0x48] sm:%s549]
                  %577 = vst [vmem:[%s557 + $0x24] sm:%s549] %v576
                  %v578 = vld [vmem:[%s556 + $0x50] sm:%s549]
                  %579 = vst [vmem:[%s557 + $0x28] sm:%s549] %v578
                  %v580 = vld [vmem:[%s556 + $0x58] sm:%s549]
                  %581 = vst [vmem:[%s557 + $0x2c] sm:%s549] %v580
                  %v582 = vld [vmem:[%s556 + $0x60] sm:%s549]
                  %583 = vst [vmem:[%s557 + $0x30] sm:%s549] %v582
                  %v584 = vld [vmem:[%s556 + $0x68] sm:%s549]
                  %585 = vst [vmem:[%s557 + $0x34] sm:%s549] %v584
                  %v586 = vld [vmem:[%s556 + $0x70] sm:%s549]
                  %587 = vst [vmem:[%s557 + $0x38] sm:%s549] %v586
                  %v588 = vld [vmem:[%s556 + $0x78] sm:%s549]
                  %589 = vst [vmem:[%s557 + $0x3c] sm:%s549] %v588
                  %v590 = vld [vmem:[%s556 + $0x80] sm:%s549]
                  %591 = vst [vmem:[%s557 + $0x40] sm:%s549] %v590
                  %v592 = vld [vmem:[%s556 + $0x88] sm:%s549]
                  %593 = vst [vmem:[%s557 + $0x44] sm:%s549] %v592
                  %v594 = vld [vmem:[%s556 + $0x90] sm:%s549]
                  %595 = vst [vmem:[%s557 + $0x48] sm:%s549] %v594
                  %v596 = vld [vmem:[%s556 + $0x98] sm:%s549]
                  %597 = vst [vmem:[%s557 + $0x4c] sm:%s549] %v596
                  %v598 = vld [vmem:[%s556 + $0xa0] sm:%s549]
                  %599 = vst [vmem:[%s557 + $0x50] sm:%s549] %v598
                  %v600 = vld [vmem:[%s556 + $0xa8] sm:%s549]
                  %601 = vst [vmem:[%s557 + $0x54] sm:%s549] %v600
                  %v602 = vld [vmem:[%s556 + $0xb0] sm:%s549]
                  %603 = vst [vmem:[%s557 + $0x58] sm:%s549] %v602
                  %v604 = vld [vmem:[%s556 + $0xb8] sm:%s549]
                  %605 = vst [vmem:[%s557 + $0x5c] sm:%s549] %v604
                  %v606 = vld [vmem:[%s556 + $0xc0] sm:%s549]
                  %607 = vst [vmem:[%s557 + $0x60] sm:%s549] %v606
                  %v608 = vld [vmem:[%s556 + $0xc8] sm:%s549]
                  %609 = vst [vmem:[%s557 + $0x64] sm:%s549] %v608
                  %v610 = vld [vmem:[%s556 + $0xd0] sm:%s549]
                  %611 = vst [vmem:[%s557 + $0x68] sm:%s549] %v610
                  %v612 = vld [vmem:[%s556 + $0xd8] sm:%s549]
                  %613 = vst [vmem:[%s557 + $0x6c] sm:%s549] %v612
                  %v614 = vld [vmem:[%s556 + $0xe0] sm:%s549]
                  %615 = vst [vmem:[%s557 + $0x70] sm:%s549] %v614
                  %v616 = vld [vmem:[%s556 + $0xe8] sm:%s549]
                  %617 = vst [vmem:[%s557 + $0x74] sm:%s549] %v616
                  %v618 = vld [vmem:[%s556 + $0xf0] sm:%s549]
                  %619 = vst [vmem:[%s557 + $0x78] sm:%s549] %v618
                  %v620 = vld [vmem:[%s556 + $0xf8] sm:%s549]
                  %621 = vst [vmem:[%s557 + $0x7c] sm:%s549] %v620
                  %v622 = vld [vmem:[%s556 + $0x100] sm:%s549]
                  %623 = vst [vmem:[%s557 + $0x80] sm:%s549] %v622
                  %v624 = vld [vmem:[%s556 + $0x108] sm:%s549]
                  %625 = vst [vmem:[%s557 + $0x84] sm:%s549] %v624
                  %v626 = vld [vmem:[%s556 + $0x110] sm:%s549]
                  %627 = vst [vmem:[%s557 + $0x88] sm:%s549] %v626
                  %v628 = vld [vmem:[%s556 + $0x118] sm:%s549]
                  %629 = vst [vmem:[%s557 + $0x8c] sm:%s549] %v628
                  %v630 = vld [vmem:[%s556 + $0x120] sm:%s549]
                  %631 = vst [vmem:[%s557 + $0x90] sm:%s549] %v630
                  %v632 = vld [vmem:[%s556 + $0x128] sm:%s549]
                  %633 = vst [vmem:[%s557 + $0x94] sm:%s549] %v632
                  %v634 = vld [vmem:[%s556 + $0x130] sm:%s549]
                  %635 = vst [vmem:[%s557 + $0x98] sm:%s549] %v634
                  %v636 = vld [vmem:[%s556 + $0x138] sm:%s549]
                  %637 = vst [vmem:[%s557 + $0x9c] sm:%s549] %v636
                  %v638 = vld [vmem:[%s556 + $0x140] sm:%s549]
                  %639 = vst [vmem:[%s557 + $0xa0] sm:%s549] %v638
                  %v640 = vld [vmem:[%s556 + $0x148] sm:%s549]
                  %641 = vst [vmem:[%s557 + $0xa4] sm:%s549] %v640
                  %v642 = vld [vmem:[%s556 + $0x150] sm:%s549]
                  %643 = vst [vmem:[%s557 + $0xa8] sm:%s549] %v642
                  %v644 = vld [vmem:[%s556 + $0x158] sm:%s549]
                  %645 = vst [vmem:[%s557 + $0xac] sm:%s549] %v644
                  %v646 = vld [vmem:[%s556 + $0x160] sm:%s549]
                  %647 = vst [vmem:[%s557 + $0xb0] sm:%s549] %v646
                  %v648 = vld [vmem:[%s556 + $0x168] sm:%s549]
                  %649 = vst [vmem:[%s557 + $0xb4] sm:%s549] %v648
                  %v650 = vld [vmem:[%s556 + $0x170] sm:%s549]
                  %651 = vst [vmem:[%s557 + $0xb8] sm:%s549] %v650
                  %v652 = vld [vmem:[%s556 + $0x178] sm:%s549]
                  %653 = vst [vmem:[%s557 + $0xbc] sm:%s549] %v652
                  %v654 = vld [vmem:[%s556 + $0x180] sm:%s549]
                  %655 = vst [vmem:[%s557 + $0xc0] sm:%s549] %v654
                  %v656 = vld [vmem:[%s556 + $0x188] sm:%s549]
                  %657 = vst [vmem:[%s557 + $0xc4] sm:%s549] %v656
                  %v658 = vld [vmem:[%s556 + $0x190] sm:%s549]
                  %659 = vst [vmem:[%s557 + $0xc8] sm:%s549] %v658
                  %v660 = vld [vmem:[%s556 + $0x198] sm:%s549]
                  %661 = vst [vmem:[%s557 + $0xcc] sm:%s549] %v660
                  %v662 = vld [vmem:[%s556 + $0x1a0] sm:%s549]
                  %663 = vst [vmem:[%s557 + $0xd0] sm:%s549] %v662
                  %v664 = vld [vmem:[%s556 + $0x1a8] sm:%s549]
                  %665 = vst [vmem:[%s557 + $0xd4] sm:%s549] %v664
                  %v666 = vld [vmem:[%s556 + $0x1b0] sm:%s549]
                  %667 = vst [vmem:[%s557 + $0xd8] sm:%s549] %v666
                  %v668 = vld [vmem:[%s556 + $0x1b8] sm:%s549]
                  %669 = vst [vmem:[%s557 + $0xdc] sm:%s549] %v668
                  %v670 = vld [vmem:[%s556 + $0x1c0] sm:%s549]
                  %671 = vst [vmem:[%s557 + $0xe0] sm:%s549] %v670
                  %v672 = vld [vmem:[%s556 + $0x1c8] sm:%s549]
                  %673 = vst [vmem:[%s557 + $0xe4] sm:%s549] %v672
                  %v674 = vld [vmem:[%s556 + $0x1d0] sm:%s549]
                  %675 = vst [vmem:[%s557 + $0xe8] sm:%s549] %v674
                  %v676 = vld [vmem:[%s556 + $0x1d8] sm:%s549]
                  %677 = vst [vmem:[%s557 + $0xec] sm:%s549] %v676
                  %v678 = vld [vmem:[%s556 + $0x1e0] sm:%s549]
                  %679 = vst [vmem:[%s557 + $0xf0] sm:%s549] %v678
                  %v680 = vld [vmem:[%s556 + $0x1e8] sm:%s549]
                  %681 = vst [vmem:[%s557 + $0xf4] sm:%s549] %v680
                  %v682 = vld [vmem:[%s556 + $0x1f0] sm:%s549]
                  %683 = vst [vmem:[%s557 + $0xf8] sm:%s549] %v682
                  %v684 = vld [vmem:[%s556 + $0x1f8] sm:%s549]
                  %685 = vst [vmem:[%s557 + $0xfc] sm:%s549] %v684
                  %v686 = vld [vmem:[%s556 + $0x200] sm:%s549]
                  %687 = vst [vmem:[%s557 + $0x100] sm:%s549] %v686
                  %v688 = vld [vmem:[%s556 + $0x208] sm:%s549]
                  %689 = vst [vmem:[%s557 + $0x104] sm:%s549] %v688
                  %v690 = vld [vmem:[%s556 + $0x210] sm:%s549]
                  %691 = vst [vmem:[%s557 + $0x108] sm:%s549] %v690
                  %v692 = vld [vmem:[%s556 + $0x218] sm:%s549]
                  %693 = vst [vmem:[%s557 + $0x10c] sm:%s549] %v692
                  %v694 = vld [vmem:[%s556 + $0x220] sm:%s549]
                  %695 = vst [vmem:[%s557 + $0x110] sm:%s549] %v694
                  %v696 = vld [vmem:[%s556 + $0x228] sm:%s549]
                  %697 = vst [vmem:[%s557 + $0x114] sm:%s549] %v696
                  %v698 = vld [vmem:[%s556 + $0x230] sm:%s549]
                  %699 = vst [vmem:[%s557 + $0x118] sm:%s549] %v698
                  %v700 = vld [vmem:[%s556 + $0x238] sm:%s549]
                  %701 = vst [vmem:[%s557 + $0x11c] sm:%s549] %v700
                  %v702 = vld [vmem:[%s556 + $0x240] sm:%s549]
                  %703 = vst [vmem:[%s557 + $0x120] sm:%s549] %v702
                  %v704 = vld [vmem:[%s556 + $0x248] sm:%s549]
                  %705 = vst [vmem:[%s557 + $0x124] sm:%s549] %v704
                  %v706 = vld [vmem:[%s556 + $0x250] sm:%s549]
                  %707 = vst [vmem:[%s557 + $0x128] sm:%s549] %v706
                  %v708 = vld [vmem:[%s556 + $0x258] sm:%s549]
                  %709 = vst [vmem:[%s557 + $0x12c] sm:%s549] %v708
                  %v710 = vld [vmem:[%s556 + $0x260] sm:%s549]
                  %711 = vst [vmem:[%s557 + $0x130] sm:%s549] %v710
                  %v712 = vld [vmem:[%s556 + $0x268] sm:%s549]
                  %713 = vst [vmem:[%s557 + $0x134] sm:%s549] %v712
                  %v714 = vld [vmem:[%s556 + $0x270] sm:%s549]
                  %715 = vst [vmem:[%s557 + $0x138] sm:%s549] %v714
                  %v716 = vld [vmem:[%s556 + $0x278] sm:%s549]
                  %717 = vst [vmem:[%s557 + $0x13c] sm:%s549] %v716
                  %v718 = vld [vmem:[%s556 + $0x280] sm:%s549]
                  %719 = vst [vmem:[%s557 + $0x140] sm:%s549] %v718
                  %v720 = vld [vmem:[%s556 + $0x288] sm:%s549]
                  %721 = vst [vmem:[%s557 + $0x144] sm:%s549] %v720
                  %v722 = vld [vmem:[%s556 + $0x290] sm:%s549]
                  %723 = vst [vmem:[%s557 + $0x148] sm:%s549] %v722
                  %v724 = vld [vmem:[%s556 + $0x298] sm:%s549]
                  %725 = vst [vmem:[%s557 + $0x14c] sm:%s549] %v724
                  %v726 = vld [vmem:[%s556 + $0x2a0] sm:%s549]
                  %727 = vst [vmem:[%s557 + $0x150] sm:%s549] %v726
                  %v728 = vld [vmem:[%s556 + $0x2a8] sm:%s549]
                  %729 = vst [vmem:[%s557 + $0x154] sm:%s549] %v728
                  %v730 = vld [vmem:[%s556 + $0x2b0] sm:%s549]
                  %731 = vst [vmem:[%s557 + $0x158] sm:%s549] %v730
                  %v732 = vld [vmem:[%s556 + $0x2b8] sm:%s549]
                  %733 = vst [vmem:[%s557 + $0x15c] sm:%s549] %v732
                  %v734 = vld [vmem:[%s556 + $0x2c0] sm:%s549]
                  %735 = vst [vmem:[%s557 + $0x160] sm:%s549] %v734
                  %v736 = vld [vmem:[%s556 + $0x2c8] sm:%s549]
                  %737 = vst [vmem:[%s557 + $0x164] sm:%s549] %v736
                  %v738 = vld [vmem:[%s556 + $0x2d0] sm:%s549]
                  %739 = vst [vmem:[%s557 + $0x168] sm:%s549] %v738
                  %v740 = vld [vmem:[%s556 + $0x2d8] sm:%s549]
                  %741 = vst [vmem:[%s557 + $0x16c] sm:%s549] %v740
                  %v742 = vld [vmem:[%s556 + $0x2e0] sm:%s549]
                  %743 = vst [vmem:[%s557 + $0x170] sm:%s549] %v742
                  %v744 = vld [vmem:[%s556 + $0x2e8] sm:%s549]
                  %745 = vst [vmem:[%s557 + $0x174] sm:%s549] %v744
                  %v746 = vld [vmem:[%s556 + $0x2f0] sm:%s549]
                  %747 = vst [vmem:[%s557 + $0x178] sm:%s549] %v746
                  %v748 = vld [vmem:[%s556 + $0x2f8] sm:%s549]
                  %749 = vst [vmem:[%s557 + $0x17c] sm:%s549] %v748
                  %v750 = vld [vmem:[%s556 + $0x300] sm:%s549]
                  %751 = vst [vmem:[%s557 + $0x180] sm:%s549] %v750
                  %v752 = vld [vmem:[%s556 + $0x308] sm:%s549]
                  %753 = vst [vmem:[%s557 + $0x184] sm:%s549] %v752
                  %v754 = vld [vmem:[%s556 + $0x310] sm:%s549]
                  %755 = vst [vmem:[%s557 + $0x188] sm:%s549] %v754
                  %v756 = vld [vmem:[%s556 + $0x318] sm:%s549]
                  %757 = vst [vmem:[%s557 + $0x18c] sm:%s549] %v756
                  %v758 = vld [vmem:[%s556 + $0x320] sm:%s549]
                  %759 = vst [vmem:[%s557 + $0x190] sm:%s549] %v758
                  %v760 = vld [vmem:[%s556 + $0x328] sm:%s549]
                  %761 = vst [vmem:[%s557 + $0x194] sm:%s549] %v760
                  %v762 = vld [vmem:[%s556 + $0x330] sm:%s549]
                  %763 = vst [vmem:[%s557 + $0x198] sm:%s549] %v762
                  %v764 = vld [vmem:[%s556 + $0x338] sm:%s549]
                  %765 = vst [vmem:[%s557 + $0x19c] sm:%s549] %v764
                  %v766 = vld [vmem:[%s556 + $0x340] sm:%s549]
                  %767 = vst [vmem:[%s557 + $0x1a0] sm:%s549] %v766
                  %v768 = vld [vmem:[%s556 + $0x348] sm:%s549]
                  %769 = vst [vmem:[%s557 + $0x1a4] sm:%s549] %v768
                  %v770 = vld [vmem:[%s556 + $0x350] sm:%s549]
                  %771 = vst [vmem:[%s557 + $0x1a8] sm:%s549] %v770
                  %v772 = vld [vmem:[%s556 + $0x358] sm:%s549]
                  %773 = vst [vmem:[%s557 + $0x1ac] sm:%s549] %v772
                  %v774 = vld [vmem:[%s556 + $0x360] sm:%s549]
                  %775 = vst [vmem:[%s557 + $0x1b0] sm:%s549] %v774
                  %v776 = vld [vmem:[%s556 + $0x368] sm:%s549]
                  %777 = vst [vmem:[%s557 + $0x1b4] sm:%s549] %v776
                  %v778 = vld [vmem:[%s556 + $0x370] sm:%s549]
                  %779 = vst [vmem:[%s557 + $0x1b8] sm:%s549] %v778
                  %v780 = vld [vmem:[%s556 + $0x378] sm:%s549]
                  %781 = vst [vmem:[%s557 + $0x1bc] sm:%s549] %v780
                  %v782 = vld [vmem:[%s556 + $0x380] sm:%s549]
                  %783 = vst [vmem:[%s557 + $0x1c0] sm:%s549] %v782
                  %v784 = vld [vmem:[%s556 + $0x388] sm:%s549]
                  %785 = vst [vmem:[%s557 + $0x1c4] sm:%s549] %v784
                  %v786 = vld [vmem:[%s556 + $0x390] sm:%s549]
                  %787 = vst [vmem:[%s557 + $0x1c8] sm:%s549] %v786
                  %v788 = vld [vmem:[%s556 + $0x398] sm:%s549]
                  %789 = vst [vmem:[%s557 + $0x1cc] sm:%s549] %v788
                  %v790 = vld [vmem:[%s556 + $0x3a0] sm:%s549]
                  %791 = vst [vmem:[%s557 + $0x1d0] sm:%s549] %v790
                  %v792 = vld [vmem:[%s556 + $0x3a8] sm:%s549]
                  %793 = vst [vmem:[%s557 + $0x1d4] sm:%s549] %v792
                  %v794 = vld [vmem:[%s556 + $0x3b0] sm:%s549]
                  %795 = vst [vmem:[%s557 + $0x1d8] sm:%s549] %v794
                  %v796 = vld [vmem:[%s556 + $0x3b8] sm:%s549]
                  %797 = vst [vmem:[%s557 + $0x1dc] sm:%s549] %v796
                  %v798 = vld [vmem:[%s556 + $0x3c0] sm:%s549]
                  %799 = vst [vmem:[%s557 + $0x1e0] sm:%s549] %v798
                  %v800 = vld [vmem:[%s556 + $0x3c8] sm:%s549]
                  %801 = vst [vmem:[%s557 + $0x1e4] sm:%s549] %v800
                  %v802 = vld [vmem:[%s556 + $0x3d0] sm:%s549]
                  %803 = vst [vmem:[%s557 + $0x1e8] sm:%s549] %v802
                  %v804 = vld [vmem:[%s556 + $0x3d8] sm:%s549]
                  %805 = vst [vmem:[%s557 + $0x1ec] sm:%s549] %v804
                  %v806 = vld [vmem:[%s556 + $0x3e0] sm:%s549]
                  %807 = vst [vmem:[%s557 + $0x1f0] sm:%s549] %v806
                  %v808 = vld [vmem:[%s556 + $0x3e8] sm:%s549]
                  %809 = vst [vmem:[%s557 + $0x1f4] sm:%s549] %v808
                  %v810 = vld [vmem:[%s556 + $0x3f0] sm:%s549]
                  %811 = vst [vmem:[%s557 + $0x1f8] sm:%s549] %v810
                  %v812 = vld [vmem:[%s556 + $0x3f8] sm:%s549]
                  %813 = vst [vmem:[%s557 + $0x1fc] sm:%s549] %v812
                $region75: #{embedder_forward.1} parent=62 // loop_footer
                  %s555 = sadd.s32 1, %s551
                $region76: #{embedder_forward.1} parent=62 // loop_footer_branch
                  %550 = sbr.rel target = $region72
                $region77: #{embedder_forward.1} parent=62 // loop_exit
                  _
              $region63: #{embedder_forward.1} parent=47 // pred_fallthru
                _
            $region48: #{embedder_forward.1} parent=43 // pred_fallthru
              _
            // Predicated region
            $region49: #{embedder_forward.1} parent=43 // pred_check
              _
            $region50: #{embedder_forward.1} parent=43 // pred_check_branch
              %271 = sbr.rel (0) target = $region52
            $region51: #{embedder_forward.1} parent=43 // pred_region
              %s273 = ssub.s32 16, 1
              loop: start=0, step=1, limit=1
              $region53: #{embedder_forward.1} parent=51 // loop_pre_header
                _
              $region54: #{embedder_forward.1} parent=51 // loop_header
                %s275 = sphi 0, %s279
                %p276 = scmp.ge.s32.totalorder %s275, 1
                %s280 = sphi %s265, %s265
                %s281 = sphi %s263, %s263
              $region55: #{embedder_forward.1} parent=51 // loop_header_branch
                %278 = sbr.rel (%p276) target = $region59
              $region56: #{embedder_forward.1} parent=51 // loop_body
                %v282 = vld [vmem:[%s280] sm:%s273]
                %283 = vst [vmem:[%s281] sm:%s273] %v282
                %v284 = vld [vmem:[%s280 + $0x8] sm:%s273]
                %285 = vst [vmem:[%s281 + $0x4] sm:%s273] %v284
                %v286 = vld [vmem:[%s280 + $0x10] sm:%s273]
                %287 = vst [vmem:[%s281 + $0x8] sm:%s273] %v286
                %v288 = vld [vmem:[%s280 + $0x18] sm:%s273]
                %289 = vst [vmem:[%s281 + $0xc] sm:%s273] %v288
                %v290 = vld [vmem:[%s280 + $0x20] sm:%s273]
                %291 = vst [vmem:[%s281 + $0x10] sm:%s273] %v290
                %v292 = vld [vmem:[%s280 + $0x28] sm:%s273]
                %293 = vst [vmem:[%s281 + $0x14] sm:%s273] %v292
                %v294 = vld [vmem:[%s280 + $0x30] sm:%s273]
                %295 = vst [vmem:[%s281 + $0x18] sm:%s273] %v294
                %v296 = vld [vmem:[%s280 + $0x38] sm:%s273]
                %297 = vst [vmem:[%s281 + $0x1c] sm:%s273] %v296
                %v298 = vld [vmem:[%s280 + $0x40] sm:%s273]
                %299 = vst [vmem:[%s281 + $0x20] sm:%s273] %v298
                %v300 = vld [vmem:[%s280 + $0x48] sm:%s273]
                %301 = vst [vmem:[%s281 + $0x24] sm:%s273] %v300
                %v302 = vld [vmem:[%s280 + $0x50] sm:%s273]
                %303 = vst [vmem:[%s281 + $0x28] sm:%s273] %v302
                %v304 = vld [vmem:[%s280 + $0x58] sm:%s273]
                %305 = vst [vmem:[%s281 + $0x2c] sm:%s273] %v304
                %v306 = vld [vmem:[%s280 + $0x60] sm:%s273]
                %307 = vst [vmem:[%s281 + $0x30] sm:%s273] %v306
                %v308 = vld [vmem:[%s280 + $0x68] sm:%s273]
                %309 = vst [vmem:[%s281 + $0x34] sm:%s273] %v308
                %v310 = vld [vmem:[%s280 + $0x70] sm:%s273]
                %311 = vst [vmem:[%s281 + $0x38] sm:%s273] %v310
                %v312 = vld [vmem:[%s280 + $0x78] sm:%s273]
                %313 = vst [vmem:[%s281 + $0x3c] sm:%s273] %v312
                %v314 = vld [vmem:[%s280 + $0x80] sm:%s273]
                %315 = vst [vmem:[%s281 + $0x40] sm:%s273] %v314
                %v316 = vld [vmem:[%s280 + $0x88] sm:%s273]
                %317 = vst [vmem:[%s281 + $0x44] sm:%s273] %v316
                %v318 = vld [vmem:[%s280 + $0x90] sm:%s273]
                %319 = vst [vmem:[%s281 + $0x48] sm:%s273] %v318
                %v320 = vld [vmem:[%s280 + $0x98] sm:%s273]
                %321 = vst [vmem:[%s281 + $0x4c] sm:%s273] %v320
                %v322 = vld [vmem:[%s280 + $0xa0] sm:%s273]
                %323 = vst [vmem:[%s281 + $0x50] sm:%s273] %v322
                %v324 = vld [vmem:[%s280 + $0xa8] sm:%s273]
                %325 = vst [vmem:[%s281 + $0x54] sm:%s273] %v324
                %v326 = vld [vmem:[%s280 + $0xb0] sm:%s273]
                %327 = vst [vmem:[%s281 + $0x58] sm:%s273] %v326
                %v328 = vld [vmem:[%s280 + $0xb8] sm:%s273]
                %329 = vst [vmem:[%s281 + $0x5c] sm:%s273] %v328
                %v330 = vld [vmem:[%s280 + $0xc0] sm:%s273]
                %331 = vst [vmem:[%s281 + $0x60] sm:%s273] %v330
                %v332 = vld [vmem:[%s280 + $0xc8] sm:%s273]
                %333 = vst [vmem:[%s281 + $0x64] sm:%s273] %v332
                %v334 = vld [vmem:[%s280 + $0xd0] sm:%s273]
                %335 = vst [vmem:[%s281 + $0x68] sm:%s273] %v334
                %v336 = vld [vmem:[%s280 + $0xd8] sm:%s273]
                %337 = vst [vmem:[%s281 + $0x6c] sm:%s273] %v336
                %v338 = vld [vmem:[%s280 + $0xe0] sm:%s273]
                %339 = vst [vmem:[%s281 + $0x70] sm:%s273] %v338
                %v340 = vld [vmem:[%s280 + $0xe8] sm:%s273]
                %341 = vst [vmem:[%s281 + $0x74] sm:%s273] %v340
                %v342 = vld [vmem:[%s280 + $0xf0] sm:%s273]
                %343 = vst [vmem:[%s281 + $0x78] sm:%s273] %v342
                %v344 = vld [vmem:[%s280 + $0xf8] sm:%s273]
                %345 = vst [vmem:[%s281 + $0x7c] sm:%s273] %v344
                %v346 = vld [vmem:[%s280 + $0x100] sm:%s273]
                %347 = vst [vmem:[%s281 + $0x80] sm:%s273] %v346
                %v348 = vld [vmem:[%s280 + $0x108] sm:%s273]
                %349 = vst [vmem:[%s281 + $0x84] sm:%s273] %v348
                %v350 = vld [vmem:[%s280 + $0x110] sm:%s273]
                %351 = vst [vmem:[%s281 + $0x88] sm:%s273] %v350
                %v352 = vld [vmem:[%s280 + $0x118] sm:%s273]
                %353 = vst [vmem:[%s281 + $0x8c] sm:%s273] %v352
                %v354 = vld [vmem:[%s280 + $0x120] sm:%s273]
                %355 = vst [vmem:[%s281 + $0x90] sm:%s273] %v354
                %v356 = vld [vmem:[%s280 + $0x128] sm:%s273]
                %357 = vst [vmem:[%s281 + $0x94] sm:%s273] %v356
                %v358 = vld [vmem:[%s280 + $0x130] sm:%s273]
                %359 = vst [vmem:[%s281 + $0x98] sm:%s273] %v358
                %v360 = vld [vmem:[%s280 + $0x138] sm:%s273]
                %361 = vst [vmem:[%s281 + $0x9c] sm:%s273] %v360
                %v362 = vld [vmem:[%s280 + $0x140] sm:%s273]
                %363 = vst [vmem:[%s281 + $0xa0] sm:%s273] %v362
                %v364 = vld [vmem:[%s280 + $0x148] sm:%s273]
                %365 = vst [vmem:[%s281 + $0xa4] sm:%s273] %v364
                %v366 = vld [vmem:[%s280 + $0x150] sm:%s273]
                %367 = vst [vmem:[%s281 + $0xa8] sm:%s273] %v366
                %v368 = vld [vmem:[%s280 + $0x158] sm:%s273]
                %369 = vst [vmem:[%s281 + $0xac] sm:%s273] %v368
                %v370 = vld [vmem:[%s280 + $0x160] sm:%s273]
                %371 = vst [vmem:[%s281 + $0xb0] sm:%s273] %v370
                %v372 = vld [vmem:[%s280 + $0x168] sm:%s273]
                %373 = vst [vmem:[%s281 + $0xb4] sm:%s273] %v372
                %v374 = vld [vmem:[%s280 + $0x170] sm:%s273]
                %375 = vst [vmem:[%s281 + $0xb8] sm:%s273] %v374
                %v376 = vld [vmem:[%s280 + $0x178] sm:%s273]
                %377 = vst [vmem:[%s281 + $0xbc] sm:%s273] %v376
                %v378 = vld [vmem:[%s280 + $0x180] sm:%s273]
                %379 = vst [vmem:[%s281 + $0xc0] sm:%s273] %v378
                %v380 = vld [vmem:[%s280 + $0x188] sm:%s273]
                %381 = vst [vmem:[%s281 + $0xc4] sm:%s273] %v380
                %v382 = vld [vmem:[%s280 + $0x190] sm:%s273]
                %383 = vst [vmem:[%s281 + $0xc8] sm:%s273] %v382
                %v384 = vld [vmem:[%s280 + $0x198] sm:%s273]
                %385 = vst [vmem:[%s281 + $0xcc] sm:%s273] %v384
                %v386 = vld [vmem:[%s280 + $0x1a0] sm:%s273]
                %387 = vst [vmem:[%s281 + $0xd0] sm:%s273] %v386
                %v388 = vld [vmem:[%s280 + $0x1a8] sm:%s273]
                %389 = vst [vmem:[%s281 + $0xd4] sm:%s273] %v388
                %v390 = vld [vmem:[%s280 + $0x1b0] sm:%s273]
                %391 = vst [vmem:[%s281 + $0xd8] sm:%s273] %v390
                %v392 = vld [vmem:[%s280 + $0x1b8] sm:%s273]
                %393 = vst [vmem:[%s281 + $0xdc] sm:%s273] %v392
                %v394 = vld [vmem:[%s280 + $0x1c0] sm:%s273]
                %395 = vst [vmem:[%s281 + $0xe0] sm:%s273] %v394
                %v396 = vld [vmem:[%s280 + $0x1c8] sm:%s273]
                %397 = vst [vmem:[%s281 + $0xe4] sm:%s273] %v396
                %v398 = vld [vmem:[%s280 + $0x1d0] sm:%s273]
                %399 = vst [vmem:[%s281 + $0xe8] sm:%s273] %v398
                %v400 = vld [vmem:[%s280 + $0x1d8] sm:%s273]
                %401 = vst [vmem:[%s281 + $0xec] sm:%s273] %v400
                %v402 = vld [vmem:[%s280 + $0x1e0] sm:%s273]
                %403 = vst [vmem:[%s281 + $0xf0] sm:%s273] %v402
                %v404 = vld [vmem:[%s280 + $0x1e8] sm:%s273]
                %405 = vst [vmem:[%s281 + $0xf4] sm:%s273] %v404
                %v406 = vld [vmem:[%s280 + $0x1f0] sm:%s273]
                %407 = vst [vmem:[%s281 + $0xf8] sm:%s273] %v406
                %v408 = vld [vmem:[%s280 + $0x1f8] sm:%s273]
                %409 = vst [vmem:[%s281 + $0xfc] sm:%s273] %v408
                %v410 = vld [vmem:[%s280 + $0x200] sm:%s273]
                %411 = vst [vmem:[%s281 + $0x100] sm:%s273] %v410
                %v412 = vld [vmem:[%s280 + $0x208] sm:%s273]
                %413 = vst [vmem:[%s281 + $0x104] sm:%s273] %v412
                %v414 = vld [vmem:[%s280 + $0x210] sm:%s273]
                %415 = vst [vmem:[%s281 + $0x108] sm:%s273] %v414
                %v416 = vld [vmem:[%s280 + $0x218] sm:%s273]
                %417 = vst [vmem:[%s281 + $0x10c] sm:%s273] %v416
                %v418 = vld [vmem:[%s280 + $0x220] sm:%s273]
                %419 = vst [vmem:[%s281 + $0x110] sm:%s273] %v418
                %v420 = vld [vmem:[%s280 + $0x228] sm:%s273]
                %421 = vst [vmem:[%s281 + $0x114] sm:%s273] %v420
                %v422 = vld [vmem:[%s280 + $0x230] sm:%s273]
                %423 = vst [vmem:[%s281 + $0x118] sm:%s273] %v422
                %v424 = vld [vmem:[%s280 + $0x238] sm:%s273]
                %425 = vst [vmem:[%s281 + $0x11c] sm:%s273] %v424
                %v426 = vld [vmem:[%s280 + $0x240] sm:%s273]
                %427 = vst [vmem:[%s281 + $0x120] sm:%s273] %v426
                %v428 = vld [vmem:[%s280 + $0x248] sm:%s273]
                %429 = vst [vmem:[%s281 + $0x124] sm:%s273] %v428
                %v430 = vld [vmem:[%s280 + $0x250] sm:%s273]
                %431 = vst [vmem:[%s281 + $0x128] sm:%s273] %v430
                %v432 = vld [vmem:[%s280 + $0x258] sm:%s273]
                %433 = vst [vmem:[%s281 + $0x12c] sm:%s273] %v432
                %v434 = vld [vmem:[%s280 + $0x260] sm:%s273]
                %435 = vst [vmem:[%s281 + $0x130] sm:%s273] %v434
                %v436 = vld [vmem:[%s280 + $0x268] sm:%s273]
                %437 = vst [vmem:[%s281 + $0x134] sm:%s273] %v436
                %v438 = vld [vmem:[%s280 + $0x270] sm:%s273]
                %439 = vst [vmem:[%s281 + $0x138] sm:%s273] %v438
                %v440 = vld [vmem:[%s280 + $0x278] sm:%s273]
                %441 = vst [vmem:[%s281 + $0x13c] sm:%s273] %v440
                %v442 = vld [vmem:[%s280 + $0x280] sm:%s273]
                %443 = vst [vmem:[%s281 + $0x140] sm:%s273] %v442
                %v444 = vld [vmem:[%s280 + $0x288] sm:%s273]
                %445 = vst [vmem:[%s281 + $0x144] sm:%s273] %v444
                %v446 = vld [vmem:[%s280 + $0x290] sm:%s273]
                %447 = vst [vmem:[%s281 + $0x148] sm:%s273] %v446
                %v448 = vld [vmem:[%s280 + $0x298] sm:%s273]
                %449 = vst [vmem:[%s281 + $0x14c] sm:%s273] %v448
                %v450 = vld [vmem:[%s280 + $0x2a0] sm:%s273]
                %451 = vst [vmem:[%s281 + $0x150] sm:%s273] %v450
                %v452 = vld [vmem:[%s280 + $0x2a8] sm:%s273]
                %453 = vst [vmem:[%s281 + $0x154] sm:%s273] %v452
                %v454 = vld [vmem:[%s280 + $0x2b0] sm:%s273]
                %455 = vst [vmem:[%s281 + $0x158] sm:%s273] %v454
                %v456 = vld [vmem:[%s280 + $0x2b8] sm:%s273]
                %457 = vst [vmem:[%s281 + $0x15c] sm:%s273] %v456
                %v458 = vld [vmem:[%s280 + $0x2c0] sm:%s273]
                %459 = vst [vmem:[%s281 + $0x160] sm:%s273] %v458
                %v460 = vld [vmem:[%s280 + $0x2c8] sm:%s273]
                %461 = vst [vmem:[%s281 + $0x164] sm:%s273] %v460
                %v462 = vld [vmem:[%s280 + $0x2d0] sm:%s273]
                %463 = vst [vmem:[%s281 + $0x168] sm:%s273] %v462
                %v464 = vld [vmem:[%s280 + $0x2d8] sm:%s273]
                %465 = vst [vmem:[%s281 + $0x16c] sm:%s273] %v464
                %v466 = vld [vmem:[%s280 + $0x2e0] sm:%s273]
                %467 = vst [vmem:[%s281 + $0x170] sm:%s273] %v466
                %v468 = vld [vmem:[%s280 + $0x2e8] sm:%s273]
                %469 = vst [vmem:[%s281 + $0x174] sm:%s273] %v468
                %v470 = vld [vmem:[%s280 + $0x2f0] sm:%s273]
                %471 = vst [vmem:[%s281 + $0x178] sm:%s273] %v470
                %v472 = vld [vmem:[%s280 + $0x2f8] sm:%s273]
                %473 = vst [vmem:[%s281 + $0x17c] sm:%s273] %v472
                %v474 = vld [vmem:[%s280 + $0x300] sm:%s273]
                %475 = vst [vmem:[%s281 + $0x180] sm:%s273] %v474
                %v476 = vld [vmem:[%s280 + $0x308] sm:%s273]
                %477 = vst [vmem:[%s281 + $0x184] sm:%s273] %v476
                %v478 = vld [vmem:[%s280 + $0x310] sm:%s273]
                %479 = vst [vmem:[%s281 + $0x188] sm:%s273] %v478
                %v480 = vld [vmem:[%s280 + $0x318] sm:%s273]
                %481 = vst [vmem:[%s281 + $0x18c] sm:%s273] %v480
                %v482 = vld [vmem:[%s280 + $0x320] sm:%s273]
                %483 = vst [vmem:[%s281 + $0x190] sm:%s273] %v482
                %v484 = vld [vmem:[%s280 + $0x328] sm:%s273]
                %485 = vst [vmem:[%s281 + $0x194] sm:%s273] %v484
                %v486 = vld [vmem:[%s280 + $0x330] sm:%s273]
                %487 = vst [vmem:[%s281 + $0x198] sm:%s273] %v486
                %v488 = vld [vmem:[%s280 + $0x338] sm:%s273]
                %489 = vst [vmem:[%s281 + $0x19c] sm:%s273] %v488
                %v490 = vld [vmem:[%s280 + $0x340] sm:%s273]
                %491 = vst [vmem:[%s281 + $0x1a0] sm:%s273] %v490
                %v492 = vld [vmem:[%s280 + $0x348] sm:%s273]
                %493 = vst [vmem:[%s281 + $0x1a4] sm:%s273] %v492
                %v494 = vld [vmem:[%s280 + $0x350] sm:%s273]
                %495 = vst [vmem:[%s281 + $0x1a8] sm:%s273] %v494
                %v496 = vld [vmem:[%s280 + $0x358] sm:%s273]
                %497 = vst [vmem:[%s281 + $0x1ac] sm:%s273] %v496
                %v498 = vld [vmem:[%s280 + $0x360] sm:%s273]
                %499 = vst [vmem:[%s281 + $0x1b0] sm:%s273] %v498
                %v500 = vld [vmem:[%s280 + $0x368] sm:%s273]
                %501 = vst [vmem:[%s281 + $0x1b4] sm:%s273] %v500
                %v502 = vld [vmem:[%s280 + $0x370] sm:%s273]
                %503 = vst [vmem:[%s281 + $0x1b8] sm:%s273] %v502
                %v504 = vld [vmem:[%s280 + $0x378] sm:%s273]
                %505 = vst [vmem:[%s281 + $0x1bc] sm:%s273] %v504
                %v506 = vld [vmem:[%s280 + $0x380] sm:%s273]
                %507 = vst [vmem:[%s281 + $0x1c0] sm:%s273] %v506
                %v508 = vld [vmem:[%s280 + $0x388] sm:%s273]
                %509 = vst [vmem:[%s281 + $0x1c4] sm:%s273] %v508
                %v510 = vld [vmem:[%s280 + $0x390] sm:%s273]
                %511 = vst [vmem:[%s281 + $0x1c8] sm:%s273] %v510
                %v512 = vld [vmem:[%s280 + $0x398] sm:%s273]
                %513 = vst [vmem:[%s281 + $0x1cc] sm:%s273] %v512
                %v514 = vld [vmem:[%s280 + $0x3a0] sm:%s273]
                %515 = vst [vmem:[%s281 + $0x1d0] sm:%s273] %v514
                %v516 = vld [vmem:[%s280 + $0x3a8] sm:%s273]
                %517 = vst [vmem:[%s281 + $0x1d4] sm:%s273] %v516
                %v518 = vld [vmem:[%s280 + $0x3b0] sm:%s273]
                %519 = vst [vmem:[%s281 + $0x1d8] sm:%s273] %v518
                %v520 = vld [vmem:[%s280 + $0x3b8] sm:%s273]
                %521 = vst [vmem:[%s281 + $0x1dc] sm:%s273] %v520
                %v522 = vld [vmem:[%s280 + $0x3c0] sm:%s273]
                %523 = vst [vmem:[%s281 + $0x1e0] sm:%s273] %v522
                %v524 = vld [vmem:[%s280 + $0x3c8] sm:%s273]
                %525 = vst [vmem:[%s281 + $0x1e4] sm:%s273] %v524
                %v526 = vld [vmem:[%s280 + $0x3d0] sm:%s273]
                %527 = vst [vmem:[%s281 + $0x1e8] sm:%s273] %v526
                %v528 = vld [vmem:[%s280 + $0x3d8] sm:%s273]
                %529 = vst [vmem:[%s281 + $0x1ec] sm:%s273] %v528
                %v530 = vld [vmem:[%s280 + $0x3e0] sm:%s273]
                %531 = vst [vmem:[%s281 + $0x1f0] sm:%s273] %v530
                %v532 = vld [vmem:[%s280 + $0x3e8] sm:%s273]
                %533 = vst [vmem:[%s281 + $0x1f4] sm:%s273] %v532
                %v534 = vld [vmem:[%s280 + $0x3f0] sm:%s273]
                %535 = vst [vmem:[%s281 + $0x1f8] sm:%s273] %v534
                %v536 = vld [vmem:[%s280 + $0x3f8] sm:%s273]
                %537 = vst [vmem:[%s281 + $0x1fc] sm:%s273] %v536
              $region57: #{embedder_forward.1} parent=51 // loop_footer
                %s279 = sadd.s32 1, %s275
              $region58: #{embedder_forward.1} parent=51 // loop_footer_branch
                %274 = sbr.rel target = $region54
              $region59: #{embedder_forward.1} parent=51 // loop_exit
                _
            $region52: #{embedder_forward.1} parent=43 // pred_fallthru
              _
          $region44: #{embedder_forward.1} parent=39 // pred_fallthru
            _
          %814 = vnop
        $region40: #{embedder_forward.1} parent=35 // pred_fallthru
          _
        // Predicated region
        $region78: #{embedder_forward.1} parent=35 // pred_check
          %p815 = pneg %p184
        $region79: #{embedder_forward.1} parent=35 // pred_check_branch
          %817 = sbr.rel (%p815) target = $region81
        $region80: #{embedder_forward.1} parent=35 // pred_region
          %p818 = scmp.lt.s32.totalorder %s24, 1
          %s819 = scalar_select %p818, %s24, 1
          %s820 = scalar_lea.vmem %s6, %s819
        $region81: #{embedder_forward.1} parent=35 // pred_fallthru
          _
      $region36: #{embedder_forward.1} parent=5 // pred_fallthru
        _
      %p821 = scmp.le.s32.totalorder 1, %s16
      %p822 = scmp.lt.s32.totalorder %s16, 3
      %p823 = pnand %p821, %p822
      %p824 = pneg %p823
      // Predicated region
      $region82: #{embedder_forward.1} parent=5 // pred_check
        _
      $region83: #{embedder_forward.1} parent=5 // pred_check_branch
        %826 = sbr.rel (%p823) target = $region85
      $region84: #{embedder_forward.1} parent=5 // pred_region
        %s827 = ssub.s32 %s16, 1
        %s828 = sand.u32 %s151, 1
        %s829 = sand.u32 %s151, 1
        %s830 = smul.addr %s829, 512
        %s831 = scalar_lea.vmem [#allocation2], %s830
        // Predicated region
        $region86: #{embedder_forward.1} parent=84 // pred_check
          %p832 = pneg %p164
        $region87: #{embedder_forward.1} parent=84 // pred_check_branch
          %834 = sbr.rel (%p832) target = $region89
        $region88: #{embedder_forward.1} parent=84 // pred_region
          _
        $region89: #{embedder_forward.1} parent=84 // pred_fallthru
          _
        %p835 = scmp.lt.s32.totalorder %s25, 0
        %s836 = scalar_select %p835, %s25, 0
        %s837 = smul.addr %s836, 8
        %s838 = smul.addr %s837, 2
        %s839 = scalar_lea.vmem %s0, %s838
        %p840 = pneg %p54
        %p841 = pneg %p51
        %p842 = pneg %p75
        %p843 = pneg %p72
        %p844 = pneg %p96
        %p845 = pneg %p93
        %p846 = pneg %p117
        %p847 = pneg %p114
        %p848 = pneg %p138
        %p849 = pneg %p135
        %s850 = sand.u32 %s151, 1
        %s851 = sand.u32 %s151, 1
        %s852 = smul.addr %s851, 512
        %s853 = scalar_lea.vmem [#allocation2], %s852
        %p854 = pneg %p164
        %p855 = pneg %p161
        %p856 = scmp.lt.s32.totalorder %s26, 1
        %s857 = scalar_select %p856, %s26, 1
        %s858 = scalar_lea.vmem %s6, %s857
        %p859 = pneg %p190
        %p860 = pneg %p187
        %p861 = pneg %p218
        %p862 = pneg %p215
        %s863 = sand.u32 %s205, 1
        %s864 = scalar_lea.sflag [#allocation4], %s863
        %s865 = sand.u32 %s205, 1
        %s866 = smul.addr %s865, 2
        %s867 = scalar_lea.vmem [#allocation3], %s866
        %p868 = scmp.lt.s32.totalorder %s25, 0
        %s869 = scalar_select %p868, %s25, 0
        %s870 = smul.addr %s869, 8
        %s871 = smul.addr %s870, 2
        %s872 = scalar_lea.vmem %s0, %s871
        %p873 = scmp.lt.s32.totalorder %s26, 1
        %s874 = scalar_select %p873, %s26, 1
        %s875 = scalar_lea.vmem %s6, %s874
        %v876 = vld [vmem:[%s872] sm:$0xff]
        %v877 = vld [vmem:[%s872 + $0x8] sm:$0xff]
        %vm878 = vcmp.ge.f32.partialorder %v876, 0.0
        %vm879 = vcmp.ge.f32.partialorder %v877, 0.0
        %v880 = vmul.f32 %v876, 0.01
        %v881 = vmul.f32 %v877, 0.01
        %v882 = vsel %vm878, %v876, %v880
        %v883 = vsel %vm879, %v877, %v881
        %v884 = vld [vmem:[%s1] sm:$0xff]
        %v885 = vld [vmem:[%s4] sm:$0xff]
        %v886 = vadd.f32 %v885, 1e-05
        %v887 = vrsqrt.pop %v886
        %v888 = vmul.f32 %v887, %v886
        %v889 = vmul.f32 %v888, %v887
        %v890 = vmul.f32 0.5, %v889
        %v891 = vsub.f32 1.5, %v890
        %v892 = vmul.f32 %v887, %v891
        %vm893 = vweird.f32 %v886
        %vm894 = vweird.f32 %v887
        %vm895 = vmor %vm893, %vm894
        %v896 = vsel %vm895, %v887, %v892
        %v897 = vmul.f32 %v884, %v896
        %v898 = vld [vmem:[%s3] sm:$0xff]
        %v900 = vperm.slane %v898, 0
        %v901 = vperm.slane %v898, 1
        %v902 = vperm.slane %v898, 2
        %v903 = vperm.slane %v898, 3
        %v904 = vperm.slane %v898, 4
        %v905 = vperm.slane %v898, 5
        %v906 = vperm.slane %v898, 6
        %v907 = vperm.slane %v898, 7
        %v908 = vrot.slane %v901, 6
        %v909 = vrot.slane %v902, 4
        %v910 = vrot.slane %v903, 2
        %v911 = vrot.slane %v905, 6
        %v912 = vrot.slane %v906, 4
        %v913 = vrot.slane %v907, 2
        %vm914 = vcmask 1041408
        %v915 = vsel %vm914, %v900, %v908
        %vm916 = vcmask 1045508
        %v917 = vsel %vm916, %v909, %v910
        %vm918 = vcmask 1043456
        %v919 = vsel %vm918, %v915, %v917
        %v920 = vsel %vm914, %v904, %v911
        %v921 = vsel %vm916, %v912, %v913
        %v922 = vsel %vm918, %v920, %v921
        %v925 = vsub.f32 %v882, %v919
        %v926 = vsub.f32 %v883, %v922
        %v928 = vperm.slane %v897, 0
        %v929 = vperm.slane %v897, 1
        %v930 = vperm.slane %v897, 2
        %v931 = vperm.slane %v897, 3
        %v932 = vperm.slane %v897, 4
        %v933 = vperm.slane %v897, 5
        %v934 = vperm.slane %v897, 6
        %v935 = vperm.slane %v897, 7
        %v936 = vrot.slane %v929, 6
        %v937 = vrot.slane %v930, 4
        %v938 = vrot.slane %v931, 2
        %v939 = vrot.slane %v933, 6
        %v940 = vrot.slane %v934, 4
        %v941 = vrot.slane %v935, 2
        %v942 = vsel %vm914, %v928, %v936
        %v943 = vsel %vm916, %v937, %v938
        %v944 = vsel %vm918, %v942, %v943
        %v945 = vsel %vm914, %v932, %v939
        %v946 = vsel %vm916, %v940, %v941
        %v947 = vsel %vm918, %v945, %v946
        %v950 = vmul.f32 %v925, %v944
        %v951 = vmul.f32 %v926, %v947
        %v952 = vld [vmem:[%s2] sm:$0xff]
        %v954 = vperm.slane %v952, 0
        %v955 = vperm.slane %v952, 1
        %v956 = vperm.slane %v952, 2
        %v957 = vperm.slane %v952, 3
        %v958 = vperm.slane %v952, 4
        %v959 = vperm.slane %v952, 5
        %v960 = vperm.slane %v952, 6
        %v961 = vperm.slane %v952, 7
        %v962 = vrot.slane %v955, 6
        %v963 = vrot.slane %v956, 4
        %v964 = vrot.slane %v957, 2
        %v965 = vrot.slane %v959, 6
        %v966 = vrot.slane %v960, 4
        %v967 = vrot.slane %v961, 2
        %v968 = vsel %vm914, %v954, %v962
        %v969 = vsel %vm916, %v963, %v964
        %v970 = vsel %vm918, %v968, %v969
        %v971 = vsel %vm914, %v958, %v965
        %v972 = vsel %vm916, %v966, %v967
        %v973 = vsel %vm918, %v971, %v972
        %v976 = vadd.f32 %v950, %v970
        %v977 = vadd.f32 %v951, %v973
        %980 = vst [vmem:[#allocation1] ss:$4 sm:$0xff] %v976
        %s981 = scalar_lea.vmem [#allocation1], 32
        %982 = vst [vmem:[%s981] ss:$4 sm:$0xff] %v977
        %v983 = vld.sshfl [vmem:[#allocation1] sm:$0xff pattern:$0x73625140]
        %v984 = vld.sshfl [vmem:[#allocation1 + $0x8] sm:$0xff pattern:$0x73625140]
        %v985 = vld.sshfl [vmem:[#allocation1 + $0x10] sm:$0xff pattern:$0x73625140]
        %v986 = vld.sshfl [vmem:[#allocation1 + $0x18] sm:$0xff pattern:$0x73625140]
        %v987 = vld.sshfl [vmem:[#allocation1 + $0x20] sm:$0xff pattern:$0x73625140]
        %v988 = vld.sshfl [vmem:[#allocation1 + $0x28] sm:$0xff pattern:$0x73625140]
        %v989 = vld.sshfl [vmem:[#allocation1 + $0x30] sm:$0xff pattern:$0x73625140]
        %v990 = vld.sshfl [vmem:[#allocation1 + $0x38] sm:$0xff pattern:$0x73625140]
        %v999 = vpack.c.bf16 %v983, %v983
        %v1000 = vpack.c.bf16 %v984, %v984
        %v1001 = vpack.c.bf16 %v985, %v985
        %v1002 = vpack.c.bf16 %v986, %v986
        %v1003 = vpack.c.bf16 %v987, %v987
        %v1004 = vpack.c.bf16 %v988, %v988
        %v1005 = vpack.c.bf16 %v989, %v989
        %v1006 = vpack.c.bf16 %v990, %v990
        %v1007 = vld [vmem:[%s831] sm:$0xf]
        %v1008 = vld [vmem:[%s831 + $0x4] sm:$0xf]
        %v1009 = vld [vmem:[%s831 + $0x8] sm:$0xf]
        %v1010 = vld [vmem:[%s831 + $0xc] sm:$0xf]
        %v1011 = vld [vmem:[%s831 + $0x10] sm:$0xf]
        %v1012 = vld [vmem:[%s831 + $0x14] sm:$0xf]
        %v1013 = vld [vmem:[%s831 + $0x18] sm:$0xf]
        %v1014 = vld [vmem:[%s831 + $0x1c] sm:$0xf]
        %v1015 = vld [vmem:[%s831 + $0x20] sm:$0xf]
        %v1016 = vld [vmem:[%s831 + $0x24] sm:$0xf]
        %v1017 = vld [vmem:[%s831 + $0x28] sm:$0xf]
        %v1018 = vld [vmem:[%s831 + $0x2c] sm:$0xf]
        %v1019 = vld [vmem:[%s831 + $0x30] sm:$0xf]
        %v1020 = vld [vmem:[%s831 + $0x34] sm:$0xf]
        %v1021 = vld [vmem:[%s831 + $0x38] sm:$0xf]
        %v1022 = vld [vmem:[%s831 + $0x3c] sm:$0xf]
        %v1023 = vld [vmem:[%s831 + $0x40] sm:$0xf]
        %v1024 = vld [vmem:[%s831 + $0x44] sm:$0xf]
        %v1025 = vld [vmem:[%s831 + $0x48] sm:$0xf]
        %v1026 = vld [vmem:[%s831 + $0x4c] sm:$0xf]
        %v1027 = vld [vmem:[%s831 + $0x50] sm:$0xf]
        %v1028 = vld [vmem:[%s831 + $0x54] sm:$0xf]
        %v1029 = vld [vmem:[%s831 + $0x58] sm:$0xf]
        %v1030 = vld [vmem:[%s831 + $0x5c] sm:$0xf]
        %v1031 = vld [vmem:[%s831 + $0x60] sm:$0xf]
        %v1032 = vld [vmem:[%s831 + $0x64] sm:$0xf]
        %v1033 = vld [vmem:[%s831 + $0x68] sm:$0xf]
        %v1034 = vld [vmem:[%s831 + $0x6c] sm:$0xf]
        %v1035 = vld [vmem:[%s831 + $0x70] sm:$0xf]
        %v1036 = vld [vmem:[%s831 + $0x74] sm:$0xf]
        %v1037 = vld [vmem:[%s831 + $0x78] sm:$0xf]
        %v1038 = vld [vmem:[%s831 + $0x7c] sm:$0xf]
        %v1039 = vld [vmem:[%s831 + $0x80] sm:$0xf]
        %v1040 = vld [vmem:[%s831 + $0x84] sm:$0xf]
        %v1041 = vld [vmem:[%s831 + $0x88] sm:$0xf]
        %v1042 = vld [vmem:[%s831 + $0x8c] sm:$0xf]
        %v1043 = vld [vmem:[%s831 + $0x90] sm:$0xf]
        %v1044 = vld [vmem:[%s831 + $0x94] sm:$0xf]
        %v1045 = vld [vmem:[%s831 + $0x98] sm:$0xf]
        %v1046 = vld [vmem:[%s831 + $0x9c] sm:$0xf]
        %v1047 = vld [vmem:[%s831 + $0xa0] sm:$0xf]
        %v1048 = vld [vmem:[%s831 + $0xa4] sm:$0xf]
        %v1049 = vld [vmem:[%s831 + $0xa8] sm:$0xf]
        %v1050 = vld [vmem:[%s831 + $0xac] sm:$0xf]
        %v1051 = vld [vmem:[%s831 + $0xb0] sm:$0xf]
        %v1052 = vld [vmem:[%s831 + $0xb4] sm:$0xf]
        %v1053 = vld [vmem:[%s831 + $0xb8] sm:$0xf]
        %v1054 = vld [vmem:[%s831 + $0xbc] sm:$0xf]
        %v1055 = vld [vmem:[%s831 + $0xc0] sm:$0xf]
        %v1056 = vld [vmem:[%s831 + $0xc4] sm:$0xf]
        %v1057 = vld [vmem:[%s831 + $0xc8] sm:$0xf]
        %v1058 = vld [vmem:[%s831 + $0xcc] sm:$0xf]
        %v1059 = vld [vmem:[%s831 + $0xd0] sm:$0xf]
        %v1060 = vld [vmem:[%s831 + $0xd4] sm:$0xf]
        %v1061 = vld [vmem:[%s831 + $0xd8] sm:$0xf]
        %v1062 = vld [vmem:[%s831 + $0xdc] sm:$0xf]
        %v1063 = vld [vmem:[%s831 + $0xe0] sm:$0xf]
        %v1064 = vld [vmem:[%s831 + $0xe4] sm:$0xf]
        %v1065 = vld [vmem:[%s831 + $0xe8] sm:$0xf]
        %v1066 = vld [vmem:[%s831 + $0xec] sm:$0xf]
        %v1067 = vld [vmem:[%s831 + $0xf0] sm:$0xf]
        %v1068 = vld [vmem:[%s831 + $0xf4] sm:$0xf]
        %v1069 = vld [vmem:[%s831 + $0xf8] sm:$0xf]
        %v1070 = vld [vmem:[%s831 + $0xfc] sm:$0xf]
        %v1071 = vld [vmem:[%s831 + $0x100] sm:$0xf]
        %v1072 = vld [vmem:[%s831 + $0x104] sm:$0xf]
        %v1073 = vld [vmem:[%s831 + $0x108] sm:$0xf]
        %v1074 = vld [vmem:[%s831 + $0x10c] sm:$0xf]
        %v1075 = vld [vmem:[%s831 + $0x110] sm:$0xf]
        %v1076 = vld [vmem:[%s831 + $0x114] sm:$0xf]
        %v1077 = vld [vmem:[%s831 + $0x118] sm:$0xf]
        %v1078 = vld [vmem:[%s831 + $0x11c] sm:$0xf]
        %v1079 = vld [vmem:[%s831 + $0x120] sm:$0xf]
        %v1080 = vld [vmem:[%s831 + $0x124] sm:$0xf]
        %v1081 = vld [vmem:[%s831 + $0x128] sm:$0xf]
        %v1082 = vld [vmem:[%s831 + $0x12c] sm:$0xf]
        %v1083 = vld [vmem:[%s831 + $0x130] sm:$0xf]
        %v1084 = vld [vmem:[%s831 + $0x134] sm:$0xf]
        %v1085 = vld [vmem:[%s831 + $0x138] sm:$0xf]
        %v1086 = vld [vmem:[%s831 + $0x13c] sm:$0xf]
        %v1087 = vld [vmem:[%s831 + $0x140] sm:$0xf]
        %v1088 = vld [vmem:[%s831 + $0x144] sm:$0xf]
        %v1089 = vld [vmem:[%s831 + $0x148] sm:$0xf]
        %v1090 = vld [vmem:[%s831 + $0x14c] sm:$0xf]
        %v1091 = vld [vmem:[%s831 + $0x150] sm:$0xf]
        %v1092 = vld [vmem:[%s831 + $0x154] sm:$0xf]
        %v1093 = vld [vmem:[%s831 + $0x158] sm:$0xf]
        %v1094 = vld [vmem:[%s831 + $0x15c] sm:$0xf]
        %v1095 = vld [vmem:[%s831 + $0x160] sm:$0xf]
        %v1096 = vld [vmem:[%s831 + $0x164] sm:$0xf]
        %v1097 = vld [vmem:[%s831 + $0x168] sm:$0xf]
        %v1098 = vld [vmem:[%s831 + $0x16c] sm:$0xf]
        %v1099 = vld [vmem:[%s831 + $0x170] sm:$0xf]
        %v1100 = vld [vmem:[%s831 + $0x174] sm:$0xf]
        %v1101 = vld [vmem:[%s831 + $0x178] sm:$0xf]
        %v1102 = vld [vmem:[%s831 + $0x17c] sm:$0xf]
        %v1103 = vld [vmem:[%s831 + $0x180] sm:$0xf]
        %v1104 = vld [vmem:[%s831 + $0x184] sm:$0xf]
        %v1105 = vld [vmem:[%s831 + $0x188] sm:$0xf]
        %v1106 = vld [vmem:[%s831 + $0x18c] sm:$0xf]
        %v1107 = vld [vmem:[%s831 + $0x190] sm:$0xf]
        %v1108 = vld [vmem:[%s831 + $0x194] sm:$0xf]
        %v1109 = vld [vmem:[%s831 + $0x198] sm:$0xf]
        %v1110 = vld [vmem:[%s831 + $0x19c] sm:$0xf]
        %v1111 = vld [vmem:[%s831 + $0x1a0] sm:$0xf]
        %v1112 = vld [vmem:[%s831 + $0x1a4] sm:$0xf]
        %v1113 = vld [vmem:[%s831 + $0x1a8] sm:$0xf]
        %v1114 = vld [vmem:[%s831 + $0x1ac] sm:$0xf]
        %v1115 = vld [vmem:[%s831 + $0x1b0] sm:$0xf]
        %v1116 = vld [vmem:[%s831 + $0x1b4] sm:$0xf]
        %v1117 = vld [vmem:[%s831 + $0x1b8] sm:$0xf]
        %v1118 = vld [vmem:[%s831 + $0x1bc] sm:$0xf]
        %v1119 = vld [vmem:[%s831 + $0x1c0] sm:$0xf]
        %v1120 = vld [vmem:[%s831 + $0x1c4] sm:$0xf]
        %v1121 = vld [vmem:[%s831 + $0x1c8] sm:$0xf]
        %v1122 = vld [vmem:[%s831 + $0x1cc] sm:$0xf]
        %v1123 = vld [vmem:[%s831 + $0x1d0] sm:$0xf]
        %v1124 = vld [vmem:[%s831 + $0x1d4] sm:$0xf]
        %v1125 = vld [vmem:[%s831 + $0x1d8] sm:$0xf]
        %v1126 = vld [vmem:[%s831 + $0x1dc] sm:$0xf]
        %v1127 = vld [vmem:[%s831 + $0x1e0] sm:$0xf]
        %v1128 = vld [vmem:[%s831 + $0x1e4] sm:$0xf]
        %v1129 = vld [vmem:[%s831 + $0x1e8] sm:$0xf]
        %v1130 = vld [vmem:[%s831 + $0x1ec] sm:$0xf]
        %v1131 = vld [vmem:[%s831 + $0x1f0] sm:$0xf]
        %v1132 = vld [vmem:[%s831 + $0x1f4] sm:$0xf]
        %v1133 = vld [vmem:[%s831 + $0x1f8] sm:$0xf]
        %v1134 = vld [vmem:[%s831 + $0x1fc] sm:$0xf]
        %v1135 = vld [vmem:[%s875] sm:$0x1]
        %v1137 = vperm.slane %v1135, 0
        %v1267 = vunpack.c.l.b16 %v1007
        %v1268 = vunpack.c.l.b16 %v1008
        %v1269 = vunpack.c.l.b16 %v1009
        %v1270 = vunpack.c.l.b16 %v1010
        %v1271 = vunpack.c.l.b16 %v1011
        %v1272 = vunpack.c.l.b16 %v1012
        %v1273 = vunpack.c.l.b16 %v1013
        %v1274 = vunpack.c.l.b16 %v1014
        %v1275 = vunpack.c.l.b16 %v1015
        %v1276 = vunpack.c.l.b16 %v1016
        %v1277 = vunpack.c.l.b16 %v1017
        %v1278 = vunpack.c.l.b16 %v1018
        %v1279 = vunpack.c.l.b16 %v1019
        %v1280 = vunpack.c.l.b16 %v1020
        %v1281 = vunpack.c.l.b16 %v1021
        %v1282 = vunpack.c.l.b16 %v1022
        %v1283 = vunpack.c.l.b16 %v1023
        %v1284 = vunpack.c.l.b16 %v1024
        %v1285 = vunpack.c.l.b16 %v1025
        %v1286 = vunpack.c.l.b16 %v1026
        %v1287 = vunpack.c.l.b16 %v1027
        %v1288 = vunpack.c.l.b16 %v1028
        %v1289 = vunpack.c.l.b16 %v1029
        %v1290 = vunpack.c.l.b16 %v1030
        %v1291 = vunpack.c.l.b16 %v1031
        %v1292 = vunpack.c.l.b16 %v1032
        %v1293 = vunpack.c.l.b16 %v1033
        %v1294 = vunpack.c.l.b16 %v1034
        %v1295 = vunpack.c.l.b16 %v1035
        %v1296 = vunpack.c.l.b16 %v1036
        %v1297 = vunpack.c.l.b16 %v1037
        %v1298 = vunpack.c.l.b16 %v1038
        %v1299 = vunpack.c.l.b16 %v1039
        %v1300 = vunpack.c.l.b16 %v1040
        %v1301 = vunpack.c.l.b16 %v1041
        %v1302 = vunpack.c.l.b16 %v1042
        %v1303 = vunpack.c.l.b16 %v1043
        %v1304 = vunpack.c.l.b16 %v1044
        %v1305 = vunpack.c.l.b16 %v1045
        %v1306 = vunpack.c.l.b16 %v1046
        %v1307 = vunpack.c.l.b16 %v1047
        %v1308 = vunpack.c.l.b16 %v1048
        %v1309 = vunpack.c.l.b16 %v1049
        %v1310 = vunpack.c.l.b16 %v1050
        %v1311 = vunpack.c.l.b16 %v1051
        %v1312 = vunpack.c.l.b16 %v1052
        %v1313 = vunpack.c.l.b16 %v1053
        %v1314 = vunpack.c.l.b16 %v1054
        %v1315 = vunpack.c.l.b16 %v1055
        %v1316 = vunpack.c.l.b16 %v1056
        %v1317 = vunpack.c.l.b16 %v1057
        %v1318 = vunpack.c.l.b16 %v1058
        %v1319 = vunpack.c.l.b16 %v1059
        %v1320 = vunpack.c.l.b16 %v1060
        %v1321 = vunpack.c.l.b16 %v1061
        %v1322 = vunpack.c.l.b16 %v1062
        %v1323 = vunpack.c.l.b16 %v1063
        %v1324 = vunpack.c.l.b16 %v1064
        %v1325 = vunpack.c.l.b16 %v1065
        %v1326 = vunpack.c.l.b16 %v1066
        %v1327 = vunpack.c.l.b16 %v1067
        %v1328 = vunpack.c.l.b16 %v1068
        %v1329 = vunpack.c.l.b16 %v1069
        %v1330 = vunpack.c.l.b16 %v1070
        %v1331 = vunpack.c.l.b16 %v1071
        %v1332 = vunpack.c.l.b16 %v1072
        %v1333 = vunpack.c.l.b16 %v1073
        %v1334 = vunpack.c.l.b16 %v1074
        %v1335 = vunpack.c.l.b16 %v1075
        %v1336 = vunpack.c.l.b16 %v1076
        %v1337 = vunpack.c.l.b16 %v1077
        %v1338 = vunpack.c.l.b16 %v1078
        %v1339 = vunpack.c.l.b16 %v1079
        %v1340 = vunpack.c.l.b16 %v1080
        %v1341 = vunpack.c.l.b16 %v1081
        %v1342 = vunpack.c.l.b16 %v1082
        %v1343 = vunpack.c.l.b16 %v1083
        %v1344 = vunpack.c.l.b16 %v1084
        %v1345 = vunpack.c.l.b16 %v1085
        %v1346 = vunpack.c.l.b16 %v1086
        %v1347 = vunpack.c.l.b16 %v1087
        %v1348 = vunpack.c.l.b16 %v1088
        %v1349 = vunpack.c.l.b16 %v1089
        %v1350 = vunpack.c.l.b16 %v1090
        %v1351 = vunpack.c.l.b16 %v1091
        %v1352 = vunpack.c.l.b16 %v1092
        %v1353 = vunpack.c.l.b16 %v1093
        %v1354 = vunpack.c.l.b16 %v1094
        %v1355 = vunpack.c.l.b16 %v1095
        %v1356 = vunpack.c.l.b16 %v1096
        %v1357 = vunpack.c.l.b16 %v1097
        %v1358 = vunpack.c.l.b16 %v1098
        %v1359 = vunpack.c.l.b16 %v1099
        %v1360 = vunpack.c.l.b16 %v1100
        %v1361 = vunpack.c.l.b16 %v1101
        %v1362 = vunpack.c.l.b16 %v1102
        %v1363 = vunpack.c.l.b16 %v1103
        %v1364 = vunpack.c.l.b16 %v1104
        %v1365 = vunpack.c.l.b16 %v1105
        %v1366 = vunpack.c.l.b16 %v1106
        %v1367 = vunpack.c.l.b16 %v1107
        %v1368 = vunpack.c.l.b16 %v1108
        %v1369 = vunpack.c.l.b16 %v1109
        %v1370 = vunpack.c.l.b16 %v1110
        %v1371 = vunpack.c.l.b16 %v1111
        %v1372 = vunpack.c.l.b16 %v1112
        %v1373 = vunpack.c.l.b16 %v1113
        %v1374 = vunpack.c.l.b16 %v1114
        %v1375 = vunpack.c.l.b16 %v1115
        %v1376 = vunpack.c.l.b16 %v1116
        %v1377 = vunpack.c.l.b16 %v1117
        %v1378 = vunpack.c.l.b16 %v1118
        %v1379 = vunpack.c.l.b16 %v1119
        %v1380 = vunpack.c.l.b16 %v1120
        %v1381 = vunpack.c.l.b16 %v1121
        %v1382 = vunpack.c.l.b16 %v1122
        %v1383 = vunpack.c.l.b16 %v1123
        %v1384 = vunpack.c.l.b16 %v1124
        %v1385 = vunpack.c.l.b16 %v1125
        %v1386 = vunpack.c.l.b16 %v1126
        %v1387 = vunpack.c.l.b16 %v1127
        %v1388 = vunpack.c.l.b16 %v1128
        %v1389 = vunpack.c.l.b16 %v1129
        %v1390 = vunpack.c.l.b16 %v1130
        %v1391 = vunpack.c.l.b16 %v1131
        %v1392 = vunpack.c.l.b16 %v1132
        %v1393 = vunpack.c.l.b16 %v1133
        %v1394 = vunpack.c.l.b16 %v1134
        %v1395 = vpack.c.b16 %v1268, %v1267
        %v1396 = vpack.c.b16 %v1270, %v1269
        %v1397 = vpack.c.b16 %v1272, %v1271
        %v1398 = vpack.c.b16 %v1274, %v1273
        %v1399 = vpack.c.b16 %v1276, %v1275
        %v1400 = vpack.c.b16 %v1278, %v1277
        %v1401 = vpack.c.b16 %v1280, %v1279
        %v1402 = vpack.c.b16 %v1282, %v1281
        %v1403 = vpack.c.b16 %v1284, %v1283
        %v1404 = vpack.c.b16 %v1286, %v1285
        %v1405 = vpack.c.b16 %v1288, %v1287
        %v1406 = vpack.c.b16 %v1290, %v1289
        %v1407 = vpack.c.b16 %v1292, %v1291
        %v1408 = vpack.c.b16 %v1294, %v1293
        %v1409 = vpack.c.b16 %v1296, %v1295
        %v1410 = vpack.c.b16 %v1298, %v1297
        %v1411 = vpack.c.b16 %v1300, %v1299
        %v1412 = vpack.c.b16 %v1302, %v1301
        %v1413 = vpack.c.b16 %v1304, %v1303
        %v1414 = vpack.c.b16 %v1306, %v1305
        %v1415 = vpack.c.b16 %v1308, %v1307
        %v1416 = vpack.c.b16 %v1310, %v1309
        %v1417 = vpack.c.b16 %v1312, %v1311
        %v1418 = vpack.c.b16 %v1314, %v1313
        %v1419 = vpack.c.b16 %v1316, %v1315
        %v1420 = vpack.c.b16 %v1318, %v1317
        %v1421 = vpack.c.b16 %v1320, %v1319
        %v1422 = vpack.c.b16 %v1322, %v1321
        %v1423 = vpack.c.b16 %v1324, %v1323
        %v1424 = vpack.c.b16 %v1326, %v1325
        %v1425 = vpack.c.b16 %v1328, %v1327
        %v1426 = vpack.c.b16 %v1330, %v1329
        %v1427 = vpack.c.b16 %v1332, %v1331
        %v1428 = vpack.c.b16 %v1334, %v1333
        %v1429 = vpack.c.b16 %v1336, %v1335
        %v1430 = vpack.c.b16 %v1338, %v1337
        %v1431 = vpack.c.b16 %v1340, %v1339
        %v1432 = vpack.c.b16 %v1342, %v1341
        %v1433 = vpack.c.b16 %v1344, %v1343
        %v1434 = vpack.c.b16 %v1346, %v1345
        %v1435 = vpack.c.b16 %v1348, %v1347
        %v1436 = vpack.c.b16 %v1350, %v1349
        %v1437 = vpack.c.b16 %v1352, %v1351
        %v1438 = vpack.c.b16 %v1354, %v1353
        %v1439 = vpack.c.b16 %v1356, %v1355
        %v1440 = vpack.c.b16 %v1358, %v1357
        %v1441 = vpack.c.b16 %v1360, %v1359
        %v1442 = vpack.c.b16 %v1362, %v1361
        %v1443 = vpack.c.b16 %v1364, %v1363
        %v1444 = vpack.c.b16 %v1366, %v1365
        %v1445 = vpack.c.b16 %v1368, %v1367
        %v1446 = vpack.c.b16 %v1370, %v1369
        %v1447 = vpack.c.b16 %v1372, %v1371
        %v1448 = vpack.c.b16 %v1374, %v1373
        %v1449 = vpack.c.b16 %v1376, %v1375
        %v1450 = vpack.c.b16 %v1378, %v1377
        %v1451 = vpack.c.b16 %v1380, %v1379
        %v1452 = vpack.c.b16 %v1382, %v1381
        %v1453 = vpack.c.b16 %v1384, %v1383
        %v1454 = vpack.c.b16 %v1386, %v1385
        %v1455 = vpack.c.b16 %v1388, %v1387
        %v1456 = vpack.c.b16 %v1390, %v1389
        %v1457 = vpack.c.b16 %v1392, %v1391
        %v1458 = vpack.c.b16 %v1394, %v1393
        %1523 = vmatpush.bf16.msra.mxu0 %v1402
        %1524 = vmatpush.bf16.msra.mxu0 %v1401
        %1525 = vmatpush.bf16.msra.mxu0 %v1400
        %1526 = vmatpush.bf16.msra.mxu0 %v1399
        %1527 = vmatpush.bf16.msra.mxu0 %v1398
        %1528 = vmatpush.bf16.msra.mxu0 %v1397
        %1529 = vmatpush.bf16.msra.mxu0 %v1396
        %1530 = vmatpush.bf16.msra.mxu0 %v1395
        %1531 = vmatmul.bf16.gmra.mxu0 %v999
        %v1532 = vpop.f32.mrf.mxu0
        %v1533 = vadd.f32 %v1137, %v1532
        %v1534 = vpop.f32.mrf.mxu0
        %1535 = vdwg.mxu0
        %1536 = vmatpush.bf16.msra.mxu0 %v1410
        %1537 = vmatpush.bf16.msra.mxu0 %v1409
        %1538 = vmatpush.bf16.msra.mxu0 %v1408
        %1539 = vmatpush.bf16.msra.mxu0 %v1407
        %1540 = vmatpush.bf16.msra.mxu0 %v1406
        %1541 = vmatpush.bf16.msra.mxu0 %v1405
        %1542 = vmatpush.bf16.msra.mxu0 %v1404
        %1543 = vmatpush.bf16.msra.mxu0 %v1403
        %1544 = vmatmul.bf16.gmra.mxu0 %v1000
        %v1545 = vpop.f32.mrf.mxu0
        %v1546 = vadd.f32 %v1533, %v1545
        %v1547 = vpop.f32.mrf.mxu0
        %1548 = vdwg.mxu0
        %1549 = vmatpush.bf16.msra.mxu0 %v1418
        %1550 = vmatpush.bf16.msra.mxu0 %v1417
        %1551 = vmatpush.bf16.msra.mxu0 %v1416
        %1552 = vmatpush.bf16.msra.mxu0 %v1415
        %1553 = vmatpush.bf16.msra.mxu0 %v1414
        %1554 = vmatpush.bf16.msra.mxu0 %v1413
        %1555 = vmatpush.bf16.msra.mxu0 %v1412
        %1556 = vmatpush.bf16.msra.mxu0 %v1411
        %1557 = vmatmul.bf16.gmra.mxu0 %v1001
        %v1558 = vpop.f32.mrf.mxu0
        %v1559 = vadd.f32 %v1546, %v1558
        %v1560 = vpop.f32.mrf.mxu0
        %1561 = vdwg.mxu0
        %1562 = vmatpush.bf16.msra.mxu0 %v1426
        %1563 = vmatpush.bf16.msra.mxu0 %v1425
        %1564 = vmatpush.bf16.msra.mxu0 %v1424
        %1565 = vmatpush.bf16.msra.mxu0 %v1423
        %1566 = vmatpush.bf16.msra.mxu0 %v1422
        %1567 = vmatpush.bf16.msra.mxu0 %v1421
        %1568 = vmatpush.bf16.msra.mxu0 %v1420
        %1569 = vmatpush.bf16.msra.mxu0 %v1419
        %1570 = vmatmul.bf16.gmra.mxu0 %v1002
        %v1571 = vpop.f32.mrf.mxu0
        %v1572 = vadd.f32 %v1559, %v1571
        %v1573 = vpop.f32.mrf.mxu0
        %1574 = vdwg.mxu0
        %1575 = vmatpush.bf16.msra.mxu0 %v1434
        %1576 = vmatpush.bf16.msra.mxu0 %v1433
        %1577 = vmatpush.bf16.msra.mxu0 %v1432
        %1578 = vmatpush.bf16.msra.mxu0 %v1431
        %1579 = vmatpush.bf16.msra.mxu0 %v1430
        %1580 = vmatpush.bf16.msra.mxu0 %v1429
        %1581 = vmatpush.bf16.msra.mxu0 %v1428
        %1582 = vmatpush.bf16.msra.mxu0 %v1427
        %1583 = vmatmul.bf16.gmra.mxu0 %v1003
        %v1584 = vpop.f32.mrf.mxu0
        %v1585 = vadd.f32 %v1572, %v1584
        %v1586 = vpop.f32.mrf.mxu0
        %1587 = vdwg.mxu0
        %1588 = vmatpush.bf16.msra.mxu0 %v1442
        %1589 = vmatpush.bf16.msra.mxu0 %v1441
        %1590 = vmatpush.bf16.msra.mxu0 %v1440
        %1591 = vmatpush.bf16.msra.mxu0 %v1439
        %1592 = vmatpush.bf16.msra.mxu0 %v1438
        %1593 = vmatpush.bf16.msra.mxu0 %v1437
        %1594 = vmatpush.bf16.msra.mxu0 %v1436
        %1595 = vmatpush.bf16.msra.mxu0 %v1435
        %1596 = vmatmul.bf16.gmra.mxu0 %v1004
        %v1597 = vpop.f32.mrf.mxu0
        %v1598 = vadd.f32 %v1585, %v1597
        %v1599 = vpop.f32.mrf.mxu0
        %1600 = vdwg.mxu0
        %1601 = vmatpush.bf16.msra.mxu0 %v1450
        %1602 = vmatpush.bf16.msra.mxu0 %v1449
        %1603 = vmatpush.bf16.msra.mxu0 %v1448
        %1604 = vmatpush.bf16.msra.mxu0 %v1447
        %1605 = vmatpush.bf16.msra.mxu0 %v1446
        %1606 = vmatpush.bf16.msra.mxu0 %v1445
        %1607 = vmatpush.bf16.msra.mxu0 %v1444
        %1608 = vmatpush.bf16.msra.mxu0 %v1443
        %1609 = vmatmul.bf16.gmra.mxu0 %v1005
        %v1610 = vpop.f32.mrf.mxu0
        %v1611 = vadd.f32 %v1598, %v1610
        %v1612 = vpop.f32.mrf.mxu0
        %1613 = vdwg.mxu0
        %1614 = vmatpush.bf16.msra.mxu0 %v1458
        %1615 = vmatpush.bf16.msra.mxu0 %v1457
        %1616 = vmatpush.bf16.msra.mxu0 %v1456
        %1617 = vmatpush.bf16.msra.mxu0 %v1455
        %1618 = vmatpush.bf16.msra.mxu0 %v1454
        %1619 = vmatpush.bf16.msra.mxu0 %v1453
        %1620 = vmatpush.bf16.msra.mxu0 %v1452
        %1621 = vmatpush.bf16.msra.mxu0 %v1451
        %1622 = vmatmul.bf16.gmra.mxu0 %v1006
        %v1623 = vpop.f32.mrf.mxu0
        %v1624 = vadd.f32 %v1611, %v1623
        %v1625 = vpop.f32.mrf.mxu0
        %1626 = vdwg.mxu0
        %1627 = vst [vmem:[%s867] sm:$0x3] %v1624
        %s1628 = sand.u32 %s205, 1
        %s1629 = scalar_lea.sflag [#allocation4], %s1628
        %s1630 = sand.u32 %s205, 1
        %s1631 = smul.addr %s1630, 2
        %s1632 = scalar_lea.vmem [#allocation3], %s1631
        // Predicated region
        $region90: #{embedder_forward.1} parent=84 // pred_check
          %p1633 = pneg %p215
        $region91: #{embedder_forward.1} parent=84 // pred_check_branch
          %1635 = sbr.rel (%p1633) target = $region93
        $region92: #{embedder_forward.1} parent=84 // pred_region
          %1637 = vsyncadd %s1629, 0
          %s1638 = smul.addr %s25, 2
          %s1639 = sadd.s32 %s26, %s1638
          %s1640 = smul.addr %s1639, 2
          %s1641 = scalar_lea.hbm %s7, %s1640
          %s1643 = sshll.u32 %s1632, 4
          %s1644 = int_to_ptr.vmem [resolvable:$true] %s1643
          %s1645 = sshll.u32 %s1641, 4
          %s1646 = int_to_ptr.hbm [resolvable:$true] %s1645
          %1648 = dma.vmem_to_hbm [thread:$0]  %s1644, 32, %s1646, %s1629
        $region93: #{embedder_forward.1} parent=84 // pred_fallthru
          _
      $region85: #{embedder_forward.1} parent=5 // pred_fallthru
        _
      %p1649 = scmp.le.s32.totalorder 2, %s16
      // Predicated region
      $region94: #{embedder_forward.1} parent=5 // pred_check
        %p1650 = pneg %p1649
      $region95: #{embedder_forward.1} parent=5 // pred_check_branch
        %1652 = sbr.rel (%p1650) target = $region97
      $region96: #{embedder_forward.1} parent=5 // pred_region
        %s1653 = ssub.s32 %s16, 2
        // Predicated region
        $region98: #{embedder_forward.1} parent=96 // pred_check
          %p1654 = pneg %p221
        $region99: #{embedder_forward.1} parent=96 // pred_check_branch
          %1656 = sbr.rel (%p1654) target = $region101
        $region100: #{embedder_forward.1} parent=96 // pred_region
          %s1657 = sand.u32 %s206, 1
          %s1658 = scalar_lea.sflag [#allocation4], %s1657
          %s1659 = sand.u32 %s206, 1
          %s1660 = smul.addr %s1659, 2
          %s1661 = scalar_lea.vmem [#allocation3], %s1660
          %1663 = dma.done %s1658, 32
        $region101: #{embedder_forward.1} parent=96 // pred_fallthru
          _
      $region97: #{embedder_forward.1} parent=5 // pred_fallthru
        _
    $region6: #{embedder_forward.1} parent=1 // loop_footer
      %s20 = sadd.s32 1, %s16
    $region7: #{embedder_forward.1} parent=1 // loop_footer_branch
      %15 = sbr.rel target = $region3
    $region8: #{embedder_forward.1} parent=1 // loop_exit
      _
    %1664 = vsyncpa [#allocation4], 1
    %s1665 = scalar_lea.sflag [#allocation4], 1
    %1666 = vsyncpa %s1665, 1

</llo_original>
